<compile_context>
chip_gen: v5e
topology: v5e:2x2
jax: 0.10.0
libtpu: 0.0.40
codegen_flags: <defaults>
</compile_context>

<pallas_src>
import functools

import jax
import jax.numpy as jnp
import numpy as np
from jax.experimental import pallas as pl
from jax.experimental.pallas import tpu as pltpu

BN_EPS = 1e-5


# --------------------------------------------------------------------------
# Pallas kernel (whole Tree forward for one group of B_TILE images)
# --------------------------------------------------------------------------
def _tree_kernel(x_ref, mask_ref, w11_ref, b11_ref, w12_ref, b12_ref,
                 w21_ref, b21_ref, w22_ref, b22_ref, wpj_ref, bpj_ref,
                 wr2_ref, wr1_ref, wrb_ref, brt_ref, o_ref, sbuf,
                 *, cin, cout, w2, halo, n):
    f32 = jnp.float32

    # Boundary masks (per lane position within each image): rows are
    # [valid for dh=-1, dh=+1, dw=-1, dw=+1].
    mk = mask_ref[...]
    mh = {-1: mk[0:1, :] > 0, 1: mk[1:2, :] > 0}
    mw = {-1: mk[2:3, :] > 0, 1: mk[3:4, :] > 0}

    def tap_mask(dh, dw):
        m = None
        if dh != 0:
            m = mh[dh]
        if dw != 0:
            m = mw[dw] if m is None else jnp.logical_and(m, mw[dw])
        return m

    def shifted(row0, nrows, dh, dw):
        # View v[g] = map[g + dh*W2 + dw]; positions that would cross an image
        # (or the sbuf body) boundary are select-zeroed, so the halo columns
        # never need initialization and stale VMEM can never leak through.
        k = dh * w2 + dw
        v = sbuf[row0:row0 + nrows, halo + k:halo + k + n]
        m = tap_mask(dh, dw)
        return v if m is None else jnp.where(m, v, 0.0)

    def mm(w, v):
        # MXU matmul; rhs cast to the weight dtype (no-op for f32), f32 accum.
        return jnp.dot(w, v.astype(w.dtype), preferred_element_type=f32)

    xin = x_ref[0].astype(f32)                           # (4*cin, n) phase maps
    sbuf[0:4 * cin, halo:halo + n] = xin                 # body only (128-aligned)

    # ---- downsample: MaxPool2d(2,2) == max over the four 2x2 phase maps ----
    bottom = jnp.maximum(jnp.maximum(xin[0:cin], xin[cin:2 * cin]),
                         jnp.maximum(xin[2 * cin:3 * cin], xin[3 * cin:4 * cin]))

    # ---- project: 1x1 conv + BN (no ReLU) -----------------------------------
    residual = mm(wpj_ref[...], bottom) + bpj_ref[...]

    # ---- tree1.conv1: 3x3 stride-2 conv at output resolution ----------------
    # 2x2 phase decomposition; taps sharing a shift are coalesced host-side
    # into contiguous K blocks -> 5 matmuls instead of 9, no im2col patch.
    w11 = w11_ref[...]                                   # (cout, 9*cin) grouped
    acc = mm(w11[:, 0:4 * cin], xin)                                  # shift (0, 0)
    acc = acc + mm(w11[:, 4 * cin:6 * cin], shifted(2 * cin, 2 * cin, -1, 0))
    acc = acc + mm(w11[:, 6 * cin:7 * cin], shifted(cin, cin, 0, -1))
    acc = acc + mm(w11[:, 7 * cin:8 * cin], shifted(3 * cin, cin, 0, -1))
    acc = acc + mm(w11[:, 8 * cin:9 * cin], shifted(3 * cin, cin, -1, -1))
    t1 = jnp.maximum(acc + b11_ref[...], 0.0)

    # ---- stride-1 3x3 conv: 9 per-tap matmuls from shifted sbuf views -------
    def conv3x3_s1(w_ref, b_ref, feat):
        sbuf[0:cout, halo:halo + n] = feat               # one map store per conv
        a = mm(w_ref[4], feat)                           # center tap, no reload
        for t in range(9):
            if t == 4:
                continue
            a = a + mm(w_ref[t], shifted(0, cout, t // 3 - 1, t % 3 - 1))
        return a + b_ref[...]

    # tree1.conv2 (+ projected residual, ReLU)
    # TODO(synk): BasicBlock source was not provided; this is the standard DLA
    # BasicBlock (conv3x3-BN-ReLU-conv3x3-BN-+residual-ReLU) used by FairMOT.
    out1 = jnp.maximum(conv3x3_s1(w12_ref, b12_ref, t1) + residual, 0.0)
    # tree2.conv1
    t2 = jnp.maximum(conv3x3_s1(w21_ref, b21_ref, out1), 0.0)
    # tree2.conv2 (+ out1 residual, ReLU)
    out2 = jnp.maximum(conv3x3_s1(w22_ref, b22_ref, t2) + out1, 0.0)

    # ---- root: 1x1 conv over concat([out2, out1, bottom]) as 3 slice-matmuls
    racc = (mm(wr2_ref[...], out2) + mm(wr1_ref[...], out1)
            + mm(wrb_ref[...], bottom))
    o_ref[0] = jnp.maximum(racc + brt_ref[...], 0.0).astype(o_ref.dtype)


# --------------------------------------------------------------------------
# Host-side weight preparation (eval-mode BN folding)
# --------------------------------------------------------------------------
def _bn_fold(bn):
    gamma, beta, mean, var = bn
    scale = gamma / jnp.sqrt(var + BN_EPS)
    return scale, beta - mean * scale


def _fold_taps_3x3(w_hwio, bn, cdt):
    """(3,3,Cin,Cout)+BN -> per-tap weights (9, Cout, Cin), bias (Cout, 1)."""
    scale, bias = _bn_fold(bn)
    _, _, ci, co = w_hwio.shape
    w = (w_hwio * scale).reshape(9, ci, co)
    w = jnp.transpose(w, (0, 2, 1)).astype(cdt)
    return w, bias.reshape(co, 1).astype(jnp.float32)


def _fold_1x1(w_hwio, bn, cdt):
    scale, bias = _bn_fold(bn)
    _, _, ci, co = w_hwio.shape
    w = (w_hwio * scale).reshape(ci, co).T.astype(cdt)
    return w, bias.reshape(co, 1).astype(jnp.float32)


def _group_stride2(w_taps):
    """Regroup the stride-2 conv per-tap weights (9, Cout, Cin) so that taps
    sharing one (dh, dw) phase-grid shift form contiguous K blocks:
      [shift(0,0): taps (1,1)(1,2)(2,1)(2,2) <-> phases 0..3 |
       shift(-1,0): (0,1)(0,2) <-> phases 2,3 |
       shift(0,-1): (1,0) phase1 | shift(0,-1): (2,0) phase3 |
       shift(-1,-1): (0,0) phase3]  (tap index t = kh*3 + kw)."""
    return jnp.concatenate(
        [w_taps[4], w_taps[5], w_taps[7], w_taps[8],
         w_taps[1], w_taps[2],
         w_taps[3],
         w_taps[6],
         w_taps[0]], axis=1)


def _zero_map(ndim):
    return lambda b: (0,) * ndim


def _pick_b_tile(n_batch, s2, max_lanes=512):
    """Images folded into the lane axis per grid step; prefer multiples of 128."""
    cands = [b for b in range(1, n_batch + 1)
             if n_batch % b == 0 and b * s2 <= max_lanes]
    aligned = [b for b in cands if (b * s2) % 128 == 0]
    if aligned:
        return max(aligned)
    return max(cands) if cands else 1


# --------------------------------------------------------------------------
# Wrapper
# --------------------------------------------------------------------------
def tree_forward(x_nhwc, params, compute_dtype=jnp.float32):
    """Tree(level=1, level_root=True, stride=2) forward; x is NHWC."""
    N, H, W, Cin = x_nhwc.shape
    assert H % 2 == 0 and W % 2 == 0, "MaxPool2d(2,2)/stride-2 conv assume even H, W"
    H2, W2 = H // 2, W // 2
    S2 = H2 * W2
    Cout = params["project"]["conv_w"].shape[-1]
    cdt = compute_dtype

    B_TILE = _pick_b_tile(N, S2)
    NB = N // B_TILE
    LANES = B_TILE * S2
    # sbuf body at a 128-aligned lane offset so map stores are unmasked.
    halo = ((W2 + 1 + 127) // 128) * 128

    # Layout: phase-split, channels-first (phase*Cin merged -> 16 sublanes),
    # B_TILE images folded into the lane axis.  One XLA layout pass.
    x6 = x_nhwc.reshape(NB, B_TILE, H2, 2, W2, 2, Cin)
    x6 = jnp.transpose(x6, (0, 3, 5, 6, 1, 2, 4))        # (NB, ph, pw, C, b, i, j)
    x_in = x6.reshape(NB, 4 * Cin, LANES).astype(cdt)

    # Boundary-validity masks (int32 0/1), periodic per image across the lanes.
    pos = jnp.arange(LANES, dtype=jnp.int32) % S2
    r, c = pos // W2, pos % W2
    masks = jnp.stack([r >= 1, r <= H2 - 2, c >= 1, c <= W2 - 2]).astype(jnp.int32)

    # Fold eval-mode BN into every conv.
    w11t, b11 = _fold_taps_3x3(params["tree1"]["conv1_w"], params["tree1"]["bn1"], cdt)
    w11g = _group_stride2(w11t)
    w12, b12 = _fold_taps_3x3(params["tree1"]["conv2_w"], params["tree1"]["bn2"], cdt)
    w21, b21 = _fold_taps_3x3(params["tree2"]["conv1_w"], params["tree2"]["bn1"], cdt)
    w22, b22 = _fold_taps_3x3(params["tree2"]["conv2_w"], params["tree2"]["bn2"], cdt)
    wpj, bpj = _fold_1x1(params["project"]["conv_w"], params["project"]["bn"], cdt)
    wrt, brt = _fold_1x1(params["root"]["conv_w"], params["root"]["bn"], cdt)
    # Root conv input is concat([out2, out1, bottom]); slice its weight instead
    # of ever materializing the concat.
    wr2 = wrt[:, :Cout]
    wr1 = wrt[:, Cout:2 * Cout]
    wrb = wrt[:, 2 * Cout:2 * Cout + Cin]

    args = [x_in, masks, w11g, b11, w12, b12, w21, b21, w22, b22,
            wpj, bpj, wr2, wr1, wrb, brt]
    in_specs = [pl.BlockSpec((1, 4 * Cin, LANES), lambda b: (b, 0, 0))]
    in_specs += [pl.BlockSpec(a.shape, _zero_map(a.ndim)) for a in args[1:]]

    kernel = functools.partial(_tree_kernel, cin=Cin, cout=Cout, w2=W2,
                               halo=halo, n=LANES)
    rows = max(4 * Cin, Cout)

    macs = Cout * (9 * Cin + 27 * Cout + Cin + 2 * Cout + Cin)
    in_bytes = int(x_in.size) * x_in.dtype.itemsize
    out_bytes = NB * Cout * LANES * 4
    w_bytes = sum(int(a.size) * a.dtype.itemsize for a in args[1:])
    cost = pl.CostEstimate(flops=2 * macs * S2 * N, transcendentals=0,
                           bytes_accessed=in_bytes + out_bytes + w_bytes)

    out = pl.pallas_call(
        kernel,
        grid=(NB,),
        in_specs=in_specs,
        out_specs=pl.BlockSpec((1, Cout, LANES), lambda b: (b, 0, 0)),
        out_shape=jax.ShapeDtypeStruct((NB, Cout, LANES), jnp.float32),
        scratch_shapes=[pltpu.VMEM((rows, LANES + 2 * halo), jnp.float32)],
        compiler_params=pltpu.CompilerParams(dimension_semantics=("parallel",)),
        cost_estimate=cost,
    )(*args)

    # (NB, Cout, B_TILE*S2) -> NHWC; layout plumbing on the small output slab.
    out = out.reshape(NB, Cout, B_TILE, H2, W2)
    return jnp.transpose(out, (0, 2, 3, 4, 1)).reshape(N, H2, W2, Cout)


# --------------------------------------------------------------------------
# Deterministic parameter init
# --------------------------------------------------------------------------
def init_conv(key, k, cin, cout):
    return 0.1 * jax.random.normal(key, (k, k, cin, cout), jnp.float32)


def init_bn(key, c):
    k1, k2, k3, k4 = jax.random.split(key, 4)
    gamma = 1.0 + 0.1 * jax.random.normal(k1, (c,), jnp.float32)
    beta = 0.1 * jax.random.normal(k2, (c,), jnp.float32)
    mean = 0.1 * jax.random.normal(k3, (c,), jnp.float32)
    var = 0.5 + jax.random.uniform(k4, (c,), jnp.float32)
    return gamma, beta, mean, var


def init_tree_params(key, cin, cout):
    keys = jax.random.split(key, 12)
    root_dim = 2 * cout + cin  # root_dim=0 default + level_root=True
    return dict(
        tree1=dict(conv1_w=init_conv(keys[0], 3, cin, cout), bn1=init_bn(keys[1], cout),
                   conv2_w=init_conv(keys[2], 3, cout, cout), bn2=init_bn(keys[3], cout)),
        tree2=dict(conv1_w=init_conv(keys[4], 3, cout, cout), bn1=init_bn(keys[5], cout),
                   conv2_w=init_conv(keys[6], 3, cout, cout), bn2=init_bn(keys[7], cout)),
        root=dict(conv_w=init_conv(keys[8], 1, root_dim, cout), bn=init_bn(keys[9], cout)),
        project=dict(conv_w=init_conv(keys[10], 1, cin, cout), bn=init_bn(keys[11], cout)),
    )


# --------------------------------------------------------------------------
# Pure-JAX reference (for correctness check)
# --------------------------------------------------------------------------
def _conv_ref(x, w, bn, stride=1, relu=True, residual=None):
    gamma, beta, mean, var = bn
    scale = gamma / jnp.sqrt(var + BN_EPS)
    pad = (w.shape[0] - 1) // 2
    out = jax.lax.conv_general_dilated(
        x, w, window_strides=(stride, stride),
        padding=((pad, pad), (pad, pad)),
        dimension_numbers=("NHWC", "HWIO", "NHWC"))
    out = out * scale + (beta - mean * scale)
    if residual is not None:
        out = out + residual
    if relu:
        out = jnp.maximum(out, 0.0)
    return out


def _basic_block_ref(x, residual, p, stride):
    out = _conv_ref(x, p["conv1_w"], p["bn1"], stride=stride, relu=True)
    if residual is None:
        residual = x
    return _conv_ref(out, p["conv2_w"], p["bn2"], stride=1, relu=True,
                     residual=residual)


def tree_ref(x, params):
    bottom = jax.lax.reduce_window(x, -jnp.inf, jax.lax.max,
                                   (1, 2, 2, 1), (1, 2, 2, 1), "VALID")
    residual = _conv_ref(bottom, params["project"]["conv_w"],
                         params["project"]["bn"], relu=False)
    out_1 = _basic_block_ref(x, residual, params["tree1"], stride=2)
    out_2 = _basic_block_ref(out_1, None, params["tree2"], stride=1)
    cat = jnp.concatenate([out_2, out_1, bottom], axis=-1)
    return _conv_ref(cat, params["root"]["conv_w"], params["root"]["bn"], relu=True)


# --------------------------------------------------------------------------
if __name__ == "__main__":
    key = jax.random.PRNGKey(0)
    kx, kp = jax.random.split(key)
    N, H, W, CIN, COUT = 2, 16, 16, 4, 8

    x = jax.random.normal(kx, (N, H, W, CIN), jnp.float32)
    params = init_tree_params(kp, CIN, COUT)

    ref = jax.block_until_ready(tree_ref(x, params))

    # f32 path: strict check against the XLA reference.
    out = jax.block_until_ready(tree_forward(x, params))
    assert out.shape == (N, H // 2, W // 2, COUT), out.shape
    np.testing.assert_allclose(np.asarray(out), np.asarray(ref),
                               rtol=1e-4, atol=1e-4)

    # bf16-over-DMA path (bf16 input + weights, f32 in-kernel math/accum).
    out_bf16 = jax.block_until_ready(
        tree_forward(x, params, compute_dtype=jnp.bfloat16))
    np.testing.assert_allclose(np.asarray(out_bf16), np.asarray(ref),
                               rtol=5e-2, atol=5e-2)

    print("KERNEL_OK")
</pallas_src>

<mosaic_0001>
module attributes {stable_mosaic.version = 11 : i64} {
  func.func @_tree_kernel(%arg0: i32, %arg1: memref<1x16x128xf32, #tpu.memory_space<vmem>>, %arg2: memref<4x128xi32, #tpu.memory_space<vmem>>, %arg3: memref<8x36xf32, #tpu.memory_space<vmem>>, %arg4: memref<8x1xf32, #tpu.memory_space<vmem>>, %arg5: memref<9x8x8xf32, #tpu.memory_space<vmem>>, %arg6: memref<8x1xf32, #tpu.memory_space<vmem>>, %arg7: memref<9x8x8xf32, #tpu.memory_space<vmem>>, %arg8: memref<8x1xf32, #tpu.memory_space<vmem>>, %arg9: memref<9x8x8xf32, #tpu.memory_space<vmem>>, %arg10: memref<8x1xf32, #tpu.memory_space<vmem>>, %arg11: memref<8x4xf32, #tpu.memory_space<vmem>>, %arg12: memref<8x1xf32, #tpu.memory_space<vmem>>, %arg13: memref<8x8xf32, #tpu.memory_space<vmem>>, %arg14: memref<8x8xf32, #tpu.memory_space<vmem>>, %arg15: memref<8x4xf32, #tpu.memory_space<vmem>>, %arg16: memref<8x1xf32, #tpu.memory_space<vmem>>, %arg17: memref<1x8x128xf32, #tpu.memory_space<vmem>>, %arg18: memref<16x384xf32, #tpu.memory_space<vmem>>) attributes {dimension_semantics = [#tpu.dimension_semantics<parallel>], iteration_bounds = array<i64: 1>, scalar_prefetch = 0 : i64, scratch_operands = 1 : i64, tpu.core_type = #tpu.core_type<tc>, window_params = [{transform_indices = @transform_0, window_bounds = array<i64: 1, 16, 128>}, {pipeline_mode = #tpu.pipeline_mode<synchronous>, transform_indices = @transform_1, window_bounds = array<i64: 4, 128>}, {pipeline_mode = #tpu.pipeline_mode<synchronous>, transform_indices = @transform_2, window_bounds = array<i64: 8, 36>}, {pipeline_mode = #tpu.pipeline_mode<synchronous>, transform_indices = @transform_3, window_bounds = array<i64: 8, 1>}, {pipeline_mode = #tpu.pipeline_mode<synchronous>, transform_indices = @transform_4, window_bounds = array<i64: 9, 8, 8>}, {pipeline_mode = #tpu.pipeline_mode<synchronous>, transform_indices = @transform_5, window_bounds = array<i64: 8, 1>}, {pipeline_mode = #tpu.pipeline_mode<synchronous>, transform_indices = @transform_6, window_bounds = array<i64: 9, 8, 8>}, {pipeline_mode = #tpu.pipeline_mode<synchronous>, transform_indices = @transform_7, window_bounds = array<i64: 8, 1>}, {pipeline_mode = #tpu.pipeline_mode<synchronous>, transform_indices = @transform_8, window_bounds = array<i64: 9, 8, 8>}, {pipeline_mode = #tpu.pipeline_mode<synchronous>, transform_indices = @transform_9, window_bounds = array<i64: 8, 1>}, {pipeline_mode = #tpu.pipeline_mode<synchronous>, transform_indices = @transform_10, window_bounds = array<i64: 8, 4>}, {pipeline_mode = #tpu.pipeline_mode<synchronous>, transform_indices = @transform_11, window_bounds = array<i64: 8, 1>}, {pipeline_mode = #tpu.pipeline_mode<synchronous>, transform_indices = @transform_12, window_bounds = array<i64: 8, 8>}, {pipeline_mode = #tpu.pipeline_mode<synchronous>, transform_indices = @transform_13, window_bounds = array<i64: 8, 8>}, {pipeline_mode = #tpu.pipeline_mode<synchronous>, transform_indices = @transform_14, window_bounds = array<i64: 8, 4>}, {pipeline_mode = #tpu.pipeline_mode<synchronous>, transform_indices = @transform_15, window_bounds = array<i64: 8, 1>}, {transform_indices = @transform_16, window_bounds = array<i64: 1, 8, 128>}]} {
    %c0 = arith.constant 0 : index
    %c0_0 = arith.constant 0 : index
    %0 = vector.load %arg2[%c0, %c0_0] : memref<4x128xi32, #tpu.memory_space<vmem>>, vector<4x128xi32>
    %1 = vector.extract_strided_slice %0 {offsets = [0, 0], sizes = [1, 128], strides = [1, 1]} : vector<4x128xi32> to vector<1x128xi32>
    %c0_i32 = arith.constant 0 : i32
    %2 = vector.broadcast %c0_i32 : i32 to vector<1x128xi32>
    %3 = arith.cmpi sgt, %1, %2 : vector<1x128xi32>
    %4 = vector.extract_strided_slice %0 {offsets = [1, 0], sizes = [1, 128], strides = [1, 1]} : vector<4x128xi32> to vector<1x128xi32>
    %c0_i32_1 = arith.constant 0 : i32
    %5 = vector.broadcast %c0_i32_1 : i32 to vector<1x128xi32>
    %6 = arith.cmpi sgt, %4, %5 : vector<1x128xi32>
    %7 = vector.extract_strided_slice %0 {offsets = [2, 0], sizes = [1, 128], strides = [1, 1]} : vector<4x128xi32> to vector<1x128xi32>
    %c0_i32_2 = arith.constant 0 : i32
    %8 = vector.broadcast %c0_i32_2 : i32 to vector<1x128xi32>
    %9 = arith.cmpi sgt, %7, %8 : vector<1x128xi32>
    %10 = vector.extract_strided_slice %0 {offsets = [3, 0], sizes = [1, 128], strides = [1, 1]} : vector<4x128xi32> to vector<1x128xi32>
    %c0_i32_3 = arith.constant 0 : i32
    %11 = vector.broadcast %c0_i32_3 : i32 to vector<1x128xi32>
    %12 = arith.cmpi sgt, %10, %11 : vector<1x128xi32>
    %c0_4 = arith.constant 0 : index
    %c0_5 = arith.constant 0 : index
    %c0_6 = arith.constant 0 : index
    %13 = vector.load %arg1[%c0_4, %c0_5, %c0_6] : memref<1x16x128xf32, #tpu.memory_space<vmem>>, vector<1x16x128xf32>
    %14 = vector.shape_cast %13 : vector<1x16x128xf32> to vector<16x128xf32>
    %c0_7 = arith.constant 0 : index
    %c128 = arith.constant 128 : index
    %15 = vector.load %arg18[%c0_7, %c128] : memref<16x384xf32, #tpu.memory_space<vmem>>, vector<16x128xf32>
    tpu.vector_store %arg18[%c0_7, %c128], %14 {strides = array<i32>} : memref<16x384xf32, #tpu.memory_space<vmem>>, vector<16x128xf32>,
    %16 = vector.extract_strided_slice %14 {offsets = [0, 0], sizes = [4, 128], strides = [1, 1]} : vector<16x128xf32> to vector<4x128xf32>
    %17 = vector.extract_strided_slice %14 {offsets = [4, 0], sizes = [4, 128], strides = [1, 1]} : vector<16x128xf32> to vector<4x128xf32>
    %18 = arith.maximumf %16, %17 : vector<4x128xf32>
    %19 = vector.extract_strided_slice %14 {offsets = [8, 0], sizes = [4, 128], strides = [1, 1]} : vector<16x128xf32> to vector<4x128xf32>
    %20 = vector.extract_strided_slice %14 {offsets = [12, 0], sizes = [4, 128], strides = [1, 1]} : vector<16x128xf32> to vector<4x128xf32>
    %21 = arith.maximumf %19, %20 : vector<4x128xf32>
    %22 = arith.maximumf %18, %21 : vector<4x128xf32>
    %c0_8 = arith.constant 0 : index
    %c0_9 = arith.constant 0 : index
    %23 = vector.load %arg11[%c0_8, %c0_9] : memref<8x4xf32, #tpu.memory_space<vmem>>, vector<8x4xf32>
    %cst = arith.constant dense<0.000000e+00> : vector<8x128xf32>
    %24 = tpu.matmul %23, %22, %cst {dimension_numbers = #tpu.dot_dimension_numbers<[1], [0], [0], [1], [0, 0, 1, 1], [], []>} : vector<8x4xf32>, vector<4x128xf32>, vector<8x128xf32> -> vector<8x128xf32>
    %c0_10 = arith.constant 0 : index
    %c0_11 = arith.constant 0 : index
    %25 = vector.load %arg12[%c0_10, %c0_11] : memref<8x1xf32, #tpu.memory_space<vmem>>, vector<8x1xf32>
    %26 = vector.broadcast %25 : vector<8x1xf32> to vector<8x128xf32>
    %27 = arith.addf %24, %26 : vector<8x128xf32>
    %c0_12 = arith.constant 0 : index
    %c0_13 = arith.constant 0 : index
    %28 = vector.load %arg3[%c0_12, %c0_13] : memref<8x36xf32, #tpu.memory_space<vmem>>, vector<8x36xf32>
    %29 = vector.extract_strided_slice %28 {offsets = [0, 0], sizes = [8, 16], strides = [1, 1]} : vector<8x36xf32> to vector<8x16xf32>
    %cst_14 = arith.constant dense<0.000000e+00> : vector<8x128xf32>
    %30 = tpu.matmul %29, %14, %cst_14 {dimension_numbers = #tpu.dot_dimension_numbers<[1], [0], [0], [1], [0, 0, 1, 1], [], []>} : vector<8x16xf32>, vector<16x128xf32>, vector<8x128xf32> -> vector<8x128xf32>
    %31 = vector.extract_strided_slice %28 {offsets = [0, 16], sizes = [8, 8], strides = [1, 1]} : vector<8x36xf32> to vector<8x8xf32>
    %c8 = arith.constant 8 : index
    %c120 = arith.constant 120 : index
    %32 = vector.load %arg18[%c8, %c120] : memref<16x384xf32, #tpu.memory_space<vmem>>, vector<8x128xf32>
    %cst_15 = arith.constant 0.000000e+00 : f32
    %33 = vector.shape_cast %3 : vector<1x128xi1> to vector<1x128xi1>
    %34 = vector.broadcast %33 : vector<1x128xi1> to vector<8x128xi1>
    %35 = vector.broadcast %cst_15 : f32 to vector<8x128xf32>
    %36 = arith.select %34, %32, %35 : vector<8x128xi1>, vector<8x128xf32>
    %cst_16 = arith.constant dense<0.000000e+00> : vector<8x128xf32>
    %37 = tpu.matmul %31, %36, %cst_16 {dimension_numbers = #tpu.dot_dimension_numbers<[1], [0], [0], [1], [0, 0, 1, 1], [], []>} : vector<8x8xf32>, vector<8x128xf32>, vector<8x128xf32> -> vector<8x128xf32>
    %38 = arith.addf %30, %37 : vector<8x128xf32>
    %39 = vector.extract_strided_slice %28 {offsets = [0, 24], sizes = [8, 4], strides = [1, 1]} : vector<8x36xf32> to vector<8x4xf32>
    %c4 = arith.constant 4 : index
    %c127 = arith.constant 127 : index
    %40 = vector.load %arg18[%c4, %c127] : memref<16x384xf32, #tpu.memory_space<vmem>>, vector<4x128xf32>
    %cst_17 = arith.constant 0.000000e+00 : f32
    %41 = vector.shape_cast %9 : vector<1x128xi1> to vector<1x128xi1>
    %42 = vector.broadcast %41 : vector<1x128xi1> to vector<4x128xi1>
    %43 = vector.broadcast %cst_17 : f32 to vector<4x128xf32>
    %44 = arith.select %42, %40, %43 : vector<4x128xi1>, vector<4x128xf32>
    %cst_18 = arith.constant dense<0.000000e+00> : vector<8x128xf32>
    %45 = tpu.matmul %39, %44, %cst_18 {dimension_numbers = #tpu.dot_dimension_numbers<[1], [0], [0], [1], [0, 0, 1, 1], [], []>} : vector<8x4xf32>, vector<4x128xf32>, vector<8x128xf32> -> vector<8x128xf32>
    %46 = arith.addf %38, %45 : vector<8x128xf32>
    %47 = vector.extract_strided_slice %28 {offsets = [0, 28], sizes = [8, 4], strides = [1, 1]} : vector<8x36xf32> to vector<8x4xf32>
    %c12 = arith.constant 12 : index
    %c127_19 = arith.constant 127 : index
    %48 = vector.load %arg18[%c12, %c127_19] : memref<16x384xf32, #tpu.memory_space<vmem>>, vector<4x128xf32>
    %cst_20 = arith.constant 0.000000e+00 : f32
    %49 = vector.shape_cast %9 : vector<1x128xi1> to vector<1x128xi1>
    %50 = vector.broadcast %49 : vector<1x128xi1> to vector<4x128xi1>
    %51 = vector.broadcast %cst_20 : f32 to vector<4x128xf32>
    %52 = arith.select %50, %48, %51 : vector<4x128xi1>, vector<4x128xf32>
    %cst_21 = arith.constant dense<0.000000e+00> : vector<8x128xf32>
    %53 = tpu.matmul %47, %52, %cst_21 {dimension_numbers = #tpu.dot_dimension_numbers<[1], [0], [0], [1], [0, 0, 1, 1], [], []>} : vector<8x4xf32>, vector<4x128xf32>, vector<8x128xf32> -> vector<8x128xf32>
    %54 = arith.addf %46, %53 : vector<8x128xf32>
    %55 = vector.extract_strided_slice %28 {offsets = [0, 32], sizes = [8, 4], strides = [1, 1]} : vector<8x36xf32> to vector<8x4xf32>
    %c12_22 = arith.constant 12 : index
    %c119 = arith.constant 119 : index
    %56 = vector.load %arg18[%c12_22, %c119] : memref<16x384xf32, #tpu.memory_space<vmem>>, vector<4x128xf32>
    %57 = arith.andi %3, %9 : vector<1x128xi1>
    %cst_23 = arith.constant 0.000000e+00 : f32
    %58 = vector.shape_cast %57 : vector<1x128xi1> to vector<1x128xi1>
    %59 = vector.broadcast %58 : vector<1x128xi1> to vector<4x128xi1>
    %60 = vector.broadcast %cst_23 : f32 to vector<4x128xf32>
    %61 = arith.select %59, %56, %60 : vector<4x128xi1>, vector<4x128xf32>
    %cst_24 = arith.constant dense<0.000000e+00> : vector<8x128xf32>
    %62 = tpu.matmul %55, %61, %cst_24 {dimension_numbers = #tpu.dot_dimension_numbers<[1], [0], [0], [1], [0, 0, 1, 1], [], []>} : vector<8x4xf32>, vector<4x128xf32>, vector<8x128xf32> -> vector<8x128xf32>
    %63 = arith.addf %54, %62 : vector<8x128xf32>
    %c0_25 = arith.constant 0 : index
    %c0_26 = arith.constant 0 : index
    %64 = vector.load %arg4[%c0_25, %c0_26] : memref<8x1xf32, #tpu.memory_space<vmem>>, vector<8x1xf32>
    %65 = vector.broadcast %64 : vector<8x1xf32> to vector<8x128xf32>
    %66 = arith.addf %63, %65 : vector<8x128xf32>
    %cst_27 = arith.constant 0.000000e+00 : f32
    %67 = vector.broadcast %cst_27 : f32 to vector<8x128xf32>
    %68 = arith.maximumf %66, %67 : vector<8x128xf32>
    %c0_28 = arith.constant 0 : index
    %c128_29 = arith.constant 128 : index
    %69 = vector.load %arg18[%c0_28, %c128_29] : memref<16x384xf32, #tpu.memory_space<vmem>>, vector<8x128xf32>
    tpu.vector_store %arg18[%c0_28, %c128_29], %68 {strides = array<i32>} : memref<16x384xf32, #tpu.memory_space<vmem>>, vector<8x128xf32>,
    %c4_30 = arith.constant 4 : index
    %c0_31 = arith.constant 0 : index
    %c0_32 = arith.constant 0 : index
    %70 = vector.load %arg5[%c4_30, %c0_31, %c0_32] : memref<9x8x8xf32, #tpu.memory_space<vmem>>, vector<1x8x8xf32>
    %71 = vector.shape_cast %70 : vector<1x8x8xf32> to vector<8x8xf32>
    %cst_33 = arith.constant dense<0.000000e+00> : vector<8x128xf32>
    %72 = tpu.matmul %71, %68, %cst_33 {dimension_numbers = #tpu.dot_dimension_numbers<[1], [0], [0], [1], [0, 0, 1, 1], [], []>} : vector<8x8xf32>, vector<8x128xf32>, vector<8x128xf32> -> vector<8x128xf32>
    %c0_34 = arith.constant 0 : index
    %c0_35 = arith.constant 0 : index
    %c0_36 = arith.constant 0 : index
    %73 = vector.load %arg5[%c0_34, %c0_35, %c0_36] : memref<9x8x8xf32, #tpu.memory_space<vmem>>, vector<1x8x8xf32>
    %74 = vector.shape_cast %73 : vector<1x8x8xf32> to vector<8x8xf32>
    %c0_37 = arith.constant 0 : index
    %c119_38 = arith.constant 119 : index
    %75 = vector.load %arg18[%c0_37, %c119_38] : memref<16x384xf32, #tpu.memory_space<vmem>>, vector<8x128xf32>
    %76 = arith.andi %3, %9 : vector<1x128xi1>
    %cst_39 = arith.constant 0.000000e+00 : f32
    %77 = vector.shape_cast %76 : vector<1x128xi1> to vector<1x128xi1>
    %78 = vector.broadcast %77 : vector<1x128xi1> to vector<8x128xi1>
    %79 = vector.broadcast %cst_39 : f32 to vector<8x128xf32>
    %80 = arith.select %78, %75, %79 : vector<8x128xi1>, vector<8x128xf32>
    %cst_40 = arith.constant dense<0.000000e+00> : vector<8x128xf32>
    %81 = tpu.matmul %74, %80, %cst_40 {dimension_numbers = #tpu.dot_dimension_numbers<[1], [0], [0], [1], [0, 0, 1, 1], [], []>} : vector<8x8xf32>, vector<8x128xf32>, vector<8x128xf32> -> vector<8x128xf32>
    %82 = arith.addf %72, %81 : vector<8x128xf32>
    %c1 = arith.constant 1 : index
    %c0_41 = arith.constant 0 : index
    %c0_42 = arith.constant 0 : index
    %83 = vector.load %arg5[%c1, %c0_41, %c0_42] : memref<9x8x8xf32, #tpu.memory_space<vmem>>, vector<1x8x8xf32>
    %84 = vector.shape_cast %83 : vector<1x8x8xf32> to vector<8x8xf32>
    %c0_43 = arith.constant 0 : index
    %c120_44 = arith.constant 120 : index
    %85 = vector.load %arg18[%c0_43, %c120_44] : memref<16x384xf32, #tpu.memory_space<vmem>>, vector<8x128xf32>
    %cst_45 = arith.constant 0.000000e+00 : f32
    %86 = vector.shape_cast %3 : vector<1x128xi1> to vector<1x128xi1>
    %87 = vector.broadcast %86 : vector<1x128xi1> to vector<8x128xi1>
    %88 = vector.broadcast %cst_45 : f32 to vector<8x128xf32>
    %89 = arith.select %87, %85, %88 : vector<8x128xi1>, vector<8x128xf32>
    %cst_46 = arith.constant dense<0.000000e+00> : vector<8x128xf32>
    %90 = tpu.matmul %84, %89, %cst_46 {dimension_numbers = #tpu.dot_dimension_numbers<[1], [0], [0], [1], [0, 0, 1, 1], [], []>} : vector<8x8xf32>, vector<8x128xf32>, vector<8x128xf32> -> vector<8x128xf32>
    %91 = arith.addf %82, %90 : vector<8x128xf32>
    %c2 = arith.constant 2 : index
    %c0_47 = arith.constant 0 : index
    %c0_48 = arith.constant 0 : index
    %92 = vector.load %arg5[%c2, %c0_47, %c0_48] : memref<9x8x8xf32, #tpu.memory_space<vmem>>, vector<1x8x8xf32>
    %93 = vector.shape_cast %92 : vector<1x8x8xf32> to vector<8x8xf32>
    %c0_49 = arith.constant 0 : index
    %c121 = arith.constant 121 : index
    %94 = vector.load %arg18[%c0_49, %c121] : memref<16x384xf32, #tpu.memory_space<vmem>>, vector<8x128xf32>
    %95 = arith.andi %3, %12 : vector<1x128xi1>
    %cst_50 = arith.constant 0.000000e+00 : f32
    %96 = vector.shape_cast %95 : vector<1x128xi1> to vector<1x128xi1>
    %97 = vector.broadcast %96 : vector<1x128xi1> to vector<8x128xi1>
    %98 = vector.broadcast %cst_50 : f32 to vector<8x128xf32>
    %99 = arith.select %97, %94, %98 : vector<8x128xi1>, vector<8x128xf32>
    %cst_51 = arith.constant dense<0.000000e+00> : vector<8x128xf32>
    %100 = tpu.matmul %93, %99, %cst_51 {dimension_numbers = #tpu.dot_dimension_numbers<[1], [0], [0], [1], [0, 0, 1, 1], [], []>} : vector<8x8xf32>, vector<8x128xf32>, vector<8x128xf32> -> vector<8x128xf32>
    %101 = arith.addf %91, %100 : vector<8x128xf32>
    %c3 = arith.constant 3 : index
    %c0_52 = arith.constant 0 : index
    %c0_53 = arith.constant 0 : index
    %102 = vector.load %arg5[%c3, %c0_52, %c0_53] : memref<9x8x8xf32, #tpu.memory_space<vmem>>, vector<1x8x8xf32>
    %103 = vector.shape_cast %102 : vector<1x8x8xf32> to vector<8x8xf32>
    %c0_54 = arith.constant 0 : index
    %c127_55 = arith.constant 127 : index
    %104 = vector.load %arg18[%c0_54, %c127_55] : memref<16x384xf32, #tpu.memory_space<vmem>>, vector<8x128xf32>
    %cst_56 = arith.constant 0.000000e+00 : f32
    %105 = vector.shape_cast %9 : vector<1x128xi1> to vector<1x128xi1>
    %106 = vector.broadcast %105 : vector<1x128xi1> to vector<8x128xi1>
    %107 = vector.broadcast %cst_56 : f32 to vector<8x128xf32>
    %108 = arith.select %106, %104, %107 : vector<8x128xi1>, vector<8x128xf32>
    %cst_57 = arith.constant dense<0.000000e+00> : vector<8x128xf32>
    %109 = tpu.matmul %103, %108, %cst_57 {dimension_numbers = #tpu.dot_dimension_numbers<[1], [0], [0], [1], [0, 0, 1, 1], [], []>} : vector<8x8xf32>, vector<8x128xf32>, vector<8x128xf32> -> vector<8x128xf32>
    %110 = arith.addf %101, %109 : vector<8x128xf32>
    %c5 = arith.constant 5 : index
    %c0_58 = arith.constant 0 : index
    %c0_59 = arith.constant 0 : index
    %111 = vector.load %arg5[%c5, %c0_58, %c0_59] : memref<9x8x8xf32, #tpu.memory_space<vmem>>, vector<1x8x8xf32>
    %112 = vector.shape_cast %111 : vector<1x8x8xf32> to vector<8x8xf32>
    %c0_60 = arith.constant 0 : index
    %c129 = arith.constant 129 : index
    %113 = vector.load %arg18[%c0_60, %c129] : memref<16x384xf32, #tpu.memory_space<vmem>>, vector<8x128xf32>
    %cst_61 = arith.constant 0.000000e+00 : f32
    %114 = vector.shape_cast %12 : vector<1x128xi1> to vector<1x128xi1>
    %115 = vector.broadcast %114 : vector<1x128xi1> to vector<8x128xi1>
    %116 = vector.broadcast %cst_61 : f32 to vector<8x128xf32>
    %117 = arith.select %115, %113, %116 : vector<8x128xi1>, vector<8x128xf32>
    %cst_62 = arith.constant dense<0.000000e+00> : vector<8x128xf32>
    %118 = tpu.matmul %112, %117, %cst_62 {dimension_numbers = #tpu.dot_dimension_numbers<[1], [0], [0], [1], [0, 0, 1, 1], [], []>} : vector<8x8xf32>, vector<8x128xf32>, vector<8x128xf32> -> vector<8x128xf32>
    %119 = arith.addf %110, %118 : vector<8x128xf32>
    %c6 = arith.constant 6 : index
    %c0_63 = arith.constant 0 : index
    %c0_64 = arith.constant 0 : index
    %120 = vector.load %arg5[%c6, %c0_63, %c0_64] : memref<9x8x8xf32, #tpu.memory_space<vmem>>, vector<1x8x8xf32>
    %121 = vector.shape_cast %120 : vector<1x8x8xf32> to vector<8x8xf32>
    %c0_65 = arith.constant 0 : index
    %c135 = arith.constant 135 : index
    %122 = vector.load %arg18[%c0_65, %c135] : memref<16x384xf32, #tpu.memory_space<vmem>>, vector<8x128xf32>
    %123 = arith.andi %6, %9 : vector<1x128xi1>
    %cst_66 = arith.constant 0.000000e+00 : f32
    %124 = vector.shape_cast %123 : vector<1x128xi1> to vector<1x128xi1>
    %125 = vector.broadcast %124 : vector<1x128xi1> to vector<8x128xi1>
    %126 = vector.broadcast %cst_66 : f32 to vector<8x128xf32>
    %127 = arith.select %125, %122, %126 : vector<8x128xi1>, vector<8x128xf32>
    %cst_67 = arith.constant dense<0.000000e+00> : vector<8x128xf32>
    %128 = tpu.matmul %121, %127, %cst_67 {dimension_numbers = #tpu.dot_dimension_numbers<[1], [0], [0], [1], [0, 0, 1, 1], [], []>} : vector<8x8xf32>, vector<8x128xf32>, vector<8x128xf32> -> vector<8x128xf32>
    %129 = arith.addf %119, %128 : vector<8x128xf32>
    %c7 = arith.constant 7 : index
    %c0_68 = arith.constant 0 : index
    %c0_69 = arith.constant 0 : index
    %130 = vector.load %arg5[%c7, %c0_68, %c0_69] : memref<9x8x8xf32, #tpu.memory_space<vmem>>, vector<1x8x8xf32>
    %131 = vector.shape_cast %130 : vector<1x8x8xf32> to vector<8x8xf32>
    %c0_70 = arith.constant 0 : index
    %c136 = arith.constant 136 : index
    %132 = vector.load %arg18[%c0_70, %c136] : memref<16x384xf32, #tpu.memory_space<vmem>>, vector<8x128xf32>
    %cst_71 = arith.constant 0.000000e+00 : f32
    %133 = vector.shape_cast %6 : vector<1x128xi1> to vector<1x128xi1>
    %134 = vector.broadcast %133 : vector<1x128xi1> to vector<8x128xi1>
    %135 = vector.broadcast %cst_71 : f32 to vector<8x128xf32>
    %136 = arith.select %134, %132, %135 : vector<8x128xi1>, vector<8x128xf32>
    %cst_72 = arith.constant dense<0.000000e+00> : vector<8x128xf32>
    %137 = tpu.matmul %131, %136, %cst_72 {dimension_numbers = #tpu.dot_dimension_numbers<[1], [0], [0], [1], [0, 0, 1, 1], [], []>} : vector<8x8xf32>, vector<8x128xf32>, vector<8x128xf32> -> vector<8x128xf32>
    %138 = arith.addf %129, %137 : vector<8x128xf32>
    %c8_73 = arith.constant 8 : index
    %c0_74 = arith.constant 0 : index
    %c0_75 = arith.constant 0 : index
    %139 = vector.load %arg5[%c8_73, %c0_74, %c0_75] : memref<9x8x8xf32, #tpu.memory_space<vmem>>, vector<1x8x8xf32>
    %140 = vector.shape_cast %139 : vector<1x8x8xf32> to vector<8x8xf32>
    %c0_76 = arith.constant 0 : index
    %c137 = arith.constant 137 : index
    %141 = vector.load %arg18[%c0_76, %c137] : memref<16x384xf32, #tpu.memory_space<vmem>>, vector<8x128xf32>
    %142 = arith.andi %6, %12 : vector<1x128xi1>
    %cst_77 = arith.constant 0.000000e+00 : f32
    %143 = vector.shape_cast %142 : vector<1x128xi1> to vector<1x128xi1>
    %144 = vector.broadcast %143 : vector<1x128xi1> to vector<8x128xi1>
    %145 = vector.broadcast %cst_77 : f32 to vector<8x128xf32>
    %146 = arith.select %144, %141, %145 : vector<8x128xi1>, vector<8x128xf32>
    %cst_78 = arith.constant dense<0.000000e+00> : vector<8x128xf32>
    %147 = tpu.matmul %140, %146, %cst_78 {dimension_numbers = #tpu.dot_dimension_numbers<[1], [0], [0], [1], [0, 0, 1, 1], [], []>} : vector<8x8xf32>, vector<8x128xf32>, vector<8x128xf32> -> vector<8x128xf32>
    %148 = arith.addf %138, %147 : vector<8x128xf32>
    %c0_79 = arith.constant 0 : index
    %c0_80 = arith.constant 0 : index
    %149 = vector.load %arg6[%c0_79, %c0_80] : memref<8x1xf32, #tpu.memory_space<vmem>>, vector<8x1xf32>
    %150 = vector.broadcast %149 : vector<8x1xf32> to vector<8x128xf32>
    %151 = arith.addf %148, %150 : vector<8x128xf32>
    %152 = arith.addf %151, %27 : vector<8x128xf32>
    %cst_81 = arith.constant 0.000000e+00 : f32
    %153 = vector.broadcast %cst_81 : f32 to vector<8x128xf32>
    %154 = arith.maximumf %152, %153 : vector<8x128xf32>
    %c0_82 = arith.constant 0 : index
    %c128_83 = arith.constant 128 : index
    %155 = vector.load %arg18[%c0_82, %c128_83] : memref<16x384xf32, #tpu.memory_space<vmem>>, vector<8x128xf32>
    tpu.vector_store %arg18[%c0_82, %c128_83], %154 {strides = array<i32>} : memref<16x384xf32, #tpu.memory_space<vmem>>, vector<8x128xf32>,
    %c4_84 = arith.constant 4 : index
    %c0_85 = arith.constant 0 : index
    %c0_86 = arith.constant 0 : index
    %156 = vector.load %arg7[%c4_84, %c0_85, %c0_86] : memref<9x8x8xf32, #tpu.memory_space<vmem>>, vector<1x8x8xf32>
    %157 = vector.shape_cast %156 : vector<1x8x8xf32> to vector<8x8xf32>
    %cst_87 = arith.constant dense<0.000000e+00> : vector<8x128xf32>
    %158 = tpu.matmul %157, %154, %cst_87 {dimension_numbers = #tpu.dot_dimension_numbers<[1], [0], [0], [1], [0, 0, 1, 1], [], []>} : vector<8x8xf32>, vector<8x128xf32>, vector<8x128xf32> -> vector<8x128xf32>
    %c0_88 = arith.constant 0 : index
    %c0_89 = arith.constant 0 : index
    %c0_90 = arith.constant 0 : index
    %159 = vector.load %arg7[%c0_88, %c0_89, %c0_90] : memref<9x8x8xf32, #tpu.memory_space<vmem>>, vector<1x8x8xf32>
    %160 = vector.shape_cast %159 : vector<1x8x8xf32> to vector<8x8xf32>
    %c0_91 = arith.constant 0 : index
    %c119_92 = arith.constant 119 : index
    %161 = vector.load %arg18[%c0_91, %c119_92] : memref<16x384xf32, #tpu.memory_space<vmem>>, vector<8x128xf32>
    %162 = arith.andi %3, %9 : vector<1x128xi1>
    %cst_93 = arith.constant 0.000000e+00 : f32
    %163 = vector.shape_cast %162 : vector<1x128xi1> to vector<1x128xi1>
    %164 = vector.broadcast %163 : vector<1x128xi1> to vector<8x128xi1>
    %165 = vector.broadcast %cst_93 : f32 to vector<8x128xf32>
    %166 = arith.select %164, %161, %165 : vector<8x128xi1>, vector<8x128xf32>
    %cst_94 = arith.constant dense<0.000000e+00> : vector<8x128xf32>
    %167 = tpu.matmul %160, %166, %cst_94 {dimension_numbers = #tpu.dot_dimension_numbers<[1], [0], [0], [1], [0, 0, 1, 1], [], []>} : vector<8x8xf32>, vector<8x128xf32>, vector<8x128xf32> -> vector<8x128xf32>
    %168 = arith.addf %158, %167 : vector<8x128xf32>
    %c1_95 = arith.constant 1 : index
    %c0_96 = arith.constant 0 : index
    %c0_97 = arith.constant 0 : index
    %169 = vector.load %arg7[%c1_95, %c0_96, %c0_97] : memref<9x8x8xf32, #tpu.memory_space<vmem>>, vector<1x8x8xf32>
    %170 = vector.shape_cast %169 : vector<1x8x8xf32> to vector<8x8xf32>
    %c0_98 = arith.constant 0 : index
    %c120_99 = arith.constant 120 : index
    %171 = vector.load %arg18[%c0_98, %c120_99] : memref<16x384xf32, #tpu.memory_space<vmem>>, vector<8x128xf32>
    %cst_100 = arith.constant 0.000000e+00 : f32
    %172 = vector.shape_cast %3 : vector<1x128xi1> to vector<1x128xi1>
    %173 = vector.broadcast %172 : vector<1x128xi1> to vector<8x128xi1>
    %174 = vector.broadcast %cst_100 : f32 to vector<8x128xf32>
    %175 = arith.select %173, %171, %174 : vector<8x128xi1>, vector<8x128xf32>
    %cst_101 = arith.constant dense<0.000000e+00> : vector<8x128xf32>
    %176 = tpu.matmul %170, %175, %cst_101 {dimension_numbers = #tpu.dot_dimension_numbers<[1], [0], [0], [1], [0, 0, 1, 1], [], []>} : vector<8x8xf32>, vector<8x128xf32>, vector<8x128xf32> -> vector<8x128xf32>
    %177 = arith.addf %168, %176 : vector<8x128xf32>
    %c2_102 = arith.constant 2 : index
    %c0_103 = arith.constant 0 : index
    %c0_104 = arith.constant 0 : index
    %178 = vector.load %arg7[%c2_102, %c0_103, %c0_104] : memref<9x8x8xf32, #tpu.memory_space<vmem>>, vector<1x8x8xf32>
    %179 = vector.shape_cast %178 : vector<1x8x8xf32> to vector<8x8xf32>
    %c0_105 = arith.constant 0 : index
    %c121_106 = arith.constant 121 : index
    %180 = vector.load %arg18[%c0_105, %c121_106] : memref<16x384xf32, #tpu.memory_space<vmem>>, vector<8x128xf32>
    %181 = arith.andi %3, %12 : vector<1x128xi1>
    %cst_107 = arith.constant 0.000000e+00 : f32
    %182 = vector.shape_cast %181 : vector<1x128xi1> to vector<1x128xi1>
    %183 = vector.broadcast %182 : vector<1x128xi1> to vector<8x128xi1>
    %184 = vector.broadcast %cst_107 : f32 to vector<8x128xf32>
    %185 = arith.select %183, %180, %184 : vector<8x128xi1>, vector<8x128xf32>
    %cst_108 = arith.constant dense<0.000000e+00> : vector<8x128xf32>
    %186 = tpu.matmul %179, %185, %cst_108 {dimension_numbers = #tpu.dot_dimension_numbers<[1], [0], [0], [1], [0, 0, 1, 1], [], []>} : vector<8x8xf32>, vector<8x128xf32>, vector<8x128xf32> -> vector<8x128xf32>
    %187 = arith.addf %177, %186 : vector<8x128xf32>
    %c3_109 = arith.constant 3 : index
    %c0_110 = arith.constant 0 : index
    %c0_111 = arith.constant 0 : index
    %188 = vector.load %arg7[%c3_109, %c0_110, %c0_111] : memref<9x8x8xf32, #tpu.memory_space<vmem>>, vector<1x8x8xf32>
    %189 = vector.shape_cast %188 : vector<1x8x8xf32> to vector<8x8xf32>
    %c0_112 = arith.constant 0 : index
    %c127_113 = arith.constant 127 : index
    %190 = vector.load %arg18[%c0_112, %c127_113] : memref<16x384xf32, #tpu.memory_space<vmem>>, vector<8x128xf32>
    %cst_114 = arith.constant 0.000000e+00 : f32
    %191 = vector.shape_cast %9 : vector<1x128xi1> to vector<1x128xi1>
    %192 = vector.broadcast %191 : vector<1x128xi1> to vector<8x128xi1>
    %193 = vector.broadcast %cst_114 : f32 to vector<8x128xf32>
    %194 = arith.select %192, %190, %193 : vector<8x128xi1>, vector<8x128xf32>
    %cst_115 = arith.constant dense<0.000000e+00> : vector<8x128xf32>
    %195 = tpu.matmul %189, %194, %cst_115 {dimension_numbers = #tpu.dot_dimension_numbers<[1], [0], [0], [1], [0, 0, 1, 1], [], []>} : vector<8x8xf32>, vector<8x128xf32>, vector<8x128xf32> -> vector<8x128xf32>
    %196 = arith.addf %187, %195 : vector<8x128xf32>
    %c5_116 = arith.constant 5 : index
    %c0_117 = arith.constant 0 : index
    %c0_118 = arith.constant 0 : index
    %197 = vector.load %arg7[%c5_116, %c0_117, %c0_118] : memref<9x8x8xf32, #tpu.memory_space<vmem>>, vector<1x8x8xf32>
    %198 = vector.shape_cast %197 : vector<1x8x8xf32> to vector<8x8xf32>
    %c0_119 = arith.constant 0 : index
    %c129_120 = arith.constant 129 : index
    %199 = vector.load %arg18[%c0_119, %c129_120] : memref<16x384xf32, #tpu.memory_space<vmem>>, vector<8x128xf32>
    %cst_121 = arith.constant 0.000000e+00 : f32
    %200 = vector.shape_cast %12 : vector<1x128xi1> to vector<1x128xi1>
    %201 = vector.broadcast %200 : vector<1x128xi1> to vector<8x128xi1>
    %202 = vector.broadcast %cst_121 : f32 to vector<8x128xf32>
    %203 = arith.select %201, %199, %202 : vector<8x128xi1>, vector<8x128xf32>
    %cst_122 = arith.constant dense<0.000000e+00> : vector<8x128xf32>
    %204 = tpu.matmul %198, %203, %cst_122 {dimension_numbers = #tpu.dot_dimension_numbers<[1], [0], [0], [1], [0, 0, 1, 1], [], []>} : vector<8x8xf32>, vector<8x128xf32>, vector<8x128xf32> -> vector<8x128xf32>
    %205 = arith.addf %196, %204 : vector<8x128xf32>
    %c6_123 = arith.constant 6 : index
    %c0_124 = arith.constant 0 : index
    %c0_125 = arith.constant 0 : index
    %206 = vector.load %arg7[%c6_123, %c0_124, %c0_125] : memref<9x8x8xf32, #tpu.memory_space<vmem>>, vector<1x8x8xf32>
    %207 = vector.shape_cast %206 : vector<1x8x8xf32> to vector<8x8xf32>
    %c0_126 = arith.constant 0 : index
    %c135_127 = arith.constant 135 : index
    %208 = vector.load %arg18[%c0_126, %c135_127] : memref<16x384xf32, #tpu.memory_space<vmem>>, vector<8x128xf32>
    %209 = arith.andi %6, %9 : vector<1x128xi1>
    %cst_128 = arith.constant 0.000000e+00 : f32
    %210 = vector.shape_cast %209 : vector<1x128xi1> to vector<1x128xi1>
    %211 = vector.broadcast %210 : vector<1x128xi1> to vector<8x128xi1>
    %212 = vector.broadcast %cst_128 : f32 to vector<8x128xf32>
    %213 = arith.select %211, %208, %212 : vector<8x128xi1>, vector<8x128xf32>
    %cst_129 = arith.constant dense<0.000000e+00> : vector<8x128xf32>
    %214 = tpu.matmul %207, %213, %cst_129 {dimension_numbers = #tpu.dot_dimension_numbers<[1], [0], [0], [1], [0, 0, 1, 1], [], []>} : vector<8x8xf32>, vector<8x128xf32>, vector<8x128xf32> -> vector<8x128xf32>
    %215 = arith.addf %205, %214 : vector<8x128xf32>
    %c7_130 = arith.constant 7 : index
    %c0_131 = arith.constant 0 : index
    %c0_132 = arith.constant 0 : index
    %216 = vector.load %arg7[%c7_130, %c0_131, %c0_132] : memref<9x8x8xf32, #tpu.memory_space<vmem>>, vector<1x8x8xf32>
    %217 = vector.shape_cast %216 : vector<1x8x8xf32> to vector<8x8xf32>
    %c0_133 = arith.constant 0 : index
    %c136_134 = arith.constant 136 : index
    %218 = vector.load %arg18[%c0_133, %c136_134] : memref<16x384xf32, #tpu.memory_space<vmem>>, vector<8x128xf32>
    %cst_135 = arith.constant 0.000000e+00 : f32
    %219 = vector.shape_cast %6 : vector<1x128xi1> to vector<1x128xi1>
    %220 = vector.broadcast %219 : vector<1x128xi1> to vector<8x128xi1>
    %221 = vector.broadcast %cst_135 : f32 to vector<8x128xf32>
    %222 = arith.select %220, %218, %221 : vector<8x128xi1>, vector<8x128xf32>
    %cst_136 = arith.constant dense<0.000000e+00> : vector<8x128xf32>
    %223 = tpu.matmul %217, %222, %cst_136 {dimension_numbers = #tpu.dot_dimension_numbers<[1], [0], [0], [1], [0, 0, 1, 1], [], []>} : vector<8x8xf32>, vector<8x128xf32>, vector<8x128xf32> -> vector<8x128xf32>
    %224 = arith.addf %215, %223 : vector<8x128xf32>
    %c8_137 = arith.constant 8 : index
    %c0_138 = arith.constant 0 : index
    %c0_139 = arith.constant 0 : index
    %225 = vector.load %arg7[%c8_137, %c0_138, %c0_139] : memref<9x8x8xf32, #tpu.memory_space<vmem>>, vector<1x8x8xf32>
    %226 = vector.shape_cast %225 : vector<1x8x8xf32> to vector<8x8xf32>
    %c0_140 = arith.constant 0 : index
    %c137_141 = arith.constant 137 : index
    %227 = vector.load %arg18[%c0_140, %c137_141] : memref<16x384xf32, #tpu.memory_space<vmem>>, vector<8x128xf32>
    %228 = arith.andi %6, %12 : vector<1x128xi1>
    %cst_142 = arith.constant 0.000000e+00 : f32
    %229 = vector.shape_cast %228 : vector<1x128xi1> to vector<1x128xi1>
    %230 = vector.broadcast %229 : vector<1x128xi1> to vector<8x128xi1>
    %231 = vector.broadcast %cst_142 : f32 to vector<8x128xf32>
    %232 = arith.select %230, %227, %231 : vector<8x128xi1>, vector<8x128xf32>
    %cst_143 = arith.constant dense<0.000000e+00> : vector<8x128xf32>
    %233 = tpu.matmul %226, %232, %cst_143 {dimension_numbers = #tpu.dot_dimension_numbers<[1], [0], [0], [1], [0, 0, 1, 1], [], []>} : vector<8x8xf32>, vector<8x128xf32>, vector<8x128xf32> -> vector<8x128xf32>
    %234 = arith.addf %224, %233 : vector<8x128xf32>
    %c0_144 = arith.constant 0 : index
    %c0_145 = arith.constant 0 : index
    %235 = vector.load %arg8[%c0_144, %c0_145] : memref<8x1xf32, #tpu.memory_space<vmem>>, vector<8x1xf32>
    %236 = vector.broadcast %235 : vector<8x1xf32> to vector<8x128xf32>
    %237 = arith.addf %234, %236 : vector<8x128xf32>
    %cst_146 = arith.constant 0.000000e+00 : f32
    %238 = vector.broadcast %cst_146 : f32 to vector<8x128xf32>
    %239 = arith.maximumf %237, %238 : vector<8x128xf32>
    %c0_147 = arith.constant 0 : index
    %c128_148 = arith.constant 128 : index
    %240 = vector.load %arg18[%c0_147, %c128_148] : memref<16x384xf32, #tpu.memory_space<vmem>>, vector<8x128xf32>
    tpu.vector_store %arg18[%c0_147, %c128_148], %239 {strides = array<i32>} : memref<16x384xf32, #tpu.memory_space<vmem>>, vector<8x128xf32>,
    %c4_149 = arith.constant 4 : index
    %c0_150 = arith.constant 0 : index
    %c0_151 = arith.constant 0 : index
    %241 = vector.load %arg9[%c4_149, %c0_150, %c0_151] : memref<9x8x8xf32, #tpu.memory_space<vmem>>, vector<1x8x8xf32>
    %242 = vector.shape_cast %241 : vector<1x8x8xf32> to vector<8x8xf32>
    %cst_152 = arith.constant dense<0.000000e+00> : vector<8x128xf32>
    %243 = tpu.matmul %242, %239, %cst_152 {dimension_numbers = #tpu.dot_dimension_numbers<[1], [0], [0], [1], [0, 0, 1, 1], [], []>} : vector<8x8xf32>, vector<8x128xf32>, vector<8x128xf32> -> vector<8x128xf32>
    %c0_153 = arith.constant 0 : index
    %c0_154 = arith.constant 0 : index
    %c0_155 = arith.constant 0 : index
    %244 = vector.load %arg9[%c0_153, %c0_154, %c0_155] : memref<9x8x8xf32, #tpu.memory_space<vmem>>, vector<1x8x8xf32>
    %245 = vector.shape_cast %244 : vector<1x8x8xf32> to vector<8x8xf32>
    %c0_156 = arith.constant 0 : index
    %c119_157 = arith.constant 119 : index
    %246 = vector.load %arg18[%c0_156, %c119_157] : memref<16x384xf32, #tpu.memory_space<vmem>>, vector<8x128xf32>
    %247 = arith.andi %3, %9 : vector<1x128xi1>
    %cst_158 = arith.constant 0.000000e+00 : f32
    %248 = vector.shape_cast %247 : vector<1x128xi1> to vector<1x128xi1>
    %249 = vector.broadcast %248 : vector<1x128xi1> to vector<8x128xi1>
    %250 = vector.broadcast %cst_158 : f32 to vector<8x128xf32>
    %251 = arith.select %249, %246, %250 : vector<8x128xi1>, vector<8x128xf32>
    %cst_159 = arith.constant dense<0.000000e+00> : vector<8x128xf32>
    %252 = tpu.matmul %245, %251, %cst_159 {dimension_numbers = #tpu.dot_dimension_numbers<[1], [0], [0], [1], [0, 0, 1, 1], [], []>} : vector<8x8xf32>, vector<8x128xf32>, vector<8x128xf32> -> vector<8x128xf32>
    %253 = arith.addf %243, %252 : vector<8x128xf32>
    %c1_160 = arith.constant 1 : index
    %c0_161 = arith.constant 0 : index
    %c0_162 = arith.constant 0 : index
    %254 = vector.load %arg9[%c1_160, %c0_161, %c0_162] : memref<9x8x8xf32, #tpu.memory_space<vmem>>, vector<1x8x8xf32>
    %255 = vector.shape_cast %254 : vector<1x8x8xf32> to vector<8x8xf32>
    %c0_163 = arith.constant 0 : index
    %c120_164 = arith.constant 120 : index
    %256 = vector.load %arg18[%c0_163, %c120_164] : memref<16x384xf32, #tpu.memory_space<vmem>>, vector<8x128xf32>
    %cst_165 = arith.constant 0.000000e+00 : f32
    %257 = vector.shape_cast %3 : vector<1x128xi1> to vector<1x128xi1>
    %258 = vector.broadcast %257 : vector<1x128xi1> to vector<8x128xi1>
    %259 = vector.broadcast %cst_165 : f32 to vector<8x128xf32>
    %260 = arith.select %258, %256, %259 : vector<8x128xi1>, vector<8x128xf32>
    %cst_166 = arith.constant dense<0.000000e+00> : vector<8x128xf32>
    %261 = tpu.matmul %255, %260, %cst_166 {dimension_numbers = #tpu.dot_dimension_numbers<[1], [0], [0], [1], [0, 0, 1, 1], [], []>} : vector<8x8xf32>, vector<8x128xf32>, vector<8x128xf32> -> vector<8x128xf32>
    %262 = arith.addf %253, %261 : vector<8x128xf32>
    %c2_167 = arith.constant 2 : index
    %c0_168 = arith.constant 0 : index
    %c0_169 = arith.constant 0 : index
    %263 = vector.load %arg9[%c2_167, %c0_168, %c0_169] : memref<9x8x8xf32, #tpu.memory_space<vmem>>, vector<1x8x8xf32>
    %264 = vector.shape_cast %263 : vector<1x8x8xf32> to vector<8x8xf32>
    %c0_170 = arith.constant 0 : index
    %c121_171 = arith.constant 121 : index
    %265 = vector.load %arg18[%c0_170, %c121_171] : memref<16x384xf32, #tpu.memory_space<vmem>>, vector<8x128xf32>
    %266 = arith.andi %3, %12 : vector<1x128xi1>
    %cst_172 = arith.constant 0.000000e+00 : f32
    %267 = vector.shape_cast %266 : vector<1x128xi1> to vector<1x128xi1>
    %268 = vector.broadcast %267 : vector<1x128xi1> to vector<8x128xi1>
    %269 = vector.broadcast %cst_172 : f32 to vector<8x128xf32>
    %270 = arith.select %268, %265, %269 : vector<8x128xi1>, vector<8x128xf32>
    %cst_173 = arith.constant dense<0.000000e+00> : vector<8x128xf32>
    %271 = tpu.matmul %264, %270, %cst_173 {dimension_numbers = #tpu.dot_dimension_numbers<[1], [0], [0], [1], [0, 0, 1, 1], [], []>} : vector<8x8xf32>, vector<8x128xf32>, vector<8x128xf32> -> vector<8x128xf32>
    %272 = arith.addf %262, %271 : vector<8x128xf32>
    %c3_174 = arith.constant 3 : index
    %c0_175 = arith.constant 0 : index
    %c0_176 = arith.constant 0 : index
    %273 = vector.load %arg9[%c3_174, %c0_175, %c0_176] : memref<9x8x8xf32, #tpu.memory_space<vmem>>, vector<1x8x8xf32>
    %274 = vector.shape_cast %273 : vector<1x8x8xf32> to vector<8x8xf32>
    %c0_177 = arith.constant 0 : index
    %c127_178 = arith.constant 127 : index
    %275 = vector.load %arg18[%c0_177, %c127_178] : memref<16x384xf32, #tpu.memory_space<vmem>>, vector<8x128xf32>
    %cst_179 = arith.constant 0.000000e+00 : f32
    %276 = vector.shape_cast %9 : vector<1x128xi1> to vector<1x128xi1>
    %277 = vector.broadcast %276 : vector<1x128xi1> to vector<8x128xi1>
    %278 = vector.broadcast %cst_179 : f32 to vector<8x128xf32>
    %279 = arith.select %277, %275, %278 : vector<8x128xi1>, vector<8x128xf32>
    %cst_180 = arith.constant dense<0.000000e+00> : vector<8x128xf32>
    %280 = tpu.matmul %274, %279, %cst_180 {dimension_numbers = #tpu.dot_dimension_numbers<[1], [0], [0], [1], [0, 0, 1, 1], [], []>} : vector<8x8xf32>, vector<8x128xf32>, vector<8x128xf32> -> vector<8x128xf32>
    %281 = arith.addf %272, %280 : vector<8x128xf32>
    %c5_181 = arith.constant 5 : index
    %c0_182 = arith.constant 0 : index
    %c0_183 = arith.constant 0 : index
    %282 = vector.load %arg9[%c5_181, %c0_182, %c0_183] : memref<9x8x8xf32, #tpu.memory_space<vmem>>, vector<1x8x8xf32>
    %283 = vector.shape_cast %282 : vector<1x8x8xf32> to vector<8x8xf32>
    %c0_184 = arith.constant 0 : index
    %c129_185 = arith.constant 129 : index
    %284 = vector.load %arg18[%c0_184, %c129_185] : memref<16x384xf32, #tpu.memory_space<vmem>>, vector<8x128xf32>
    %cst_186 = arith.constant 0.000000e+00 : f32
    %285 = vector.shape_cast %12 : vector<1x128xi1> to vector<1x128xi1>
    %286 = vector.broadcast %285 : vector<1x128xi1> to vector<8x128xi1>
    %287 = vector.broadcast %cst_186 : f32 to vector<8x128xf32>
    %288 = arith.select %286, %284, %287 : vector<8x128xi1>, vector<8x128xf32>
    %cst_187 = arith.constant dense<0.000000e+00> : vector<8x128xf32>
    %289 = tpu.matmul %283, %288, %cst_187 {dimension_numbers = #tpu.dot_dimension_numbers<[1], [0], [0], [1], [0, 0, 1, 1], [], []>} : vector<8x8xf32>, vector<8x128xf32>, vector<8x128xf32> -> vector<8x128xf32>
    %290 = arith.addf %281, %289 : vector<8x128xf32>
    %c6_188 = arith.constant 6 : index
    %c0_189 = arith.constant 0 : index
    %c0_190 = arith.constant 0 : index
    %291 = vector.load %arg9[%c6_188, %c0_189, %c0_190] : memref<9x8x8xf32, #tpu.memory_space<vmem>>, vector<1x8x8xf32>
    %292 = vector.shape_cast %291 : vector<1x8x8xf32> to vector<8x8xf32>
    %c0_191 = arith.constant 0 : index
    %c135_192 = arith.constant 135 : index
    %293 = vector.load %arg18[%c0_191, %c135_192] : memref<16x384xf32, #tpu.memory_space<vmem>>, vector<8x128xf32>
    %294 = arith.andi %6, %9 : vector<1x128xi1>
    %cst_193 = arith.constant 0.000000e+00 : f32
    %295 = vector.shape_cast %294 : vector<1x128xi1> to vector<1x128xi1>
    %296 = vector.broadcast %295 : vector<1x128xi1> to vector<8x128xi1>
    %297 = vector.broadcast %cst_193 : f32 to vector<8x128xf32>
    %298 = arith.select %296, %293, %297 : vector<8x128xi1>, vector<8x128xf32>
    %cst_194 = arith.constant dense<0.000000e+00> : vector<8x128xf32>
    %299 = tpu.matmul %292, %298, %cst_194 {dimension_numbers = #tpu.dot_dimension_numbers<[1], [0], [0], [1], [0, 0, 1, 1], [], []>} : vector<8x8xf32>, vector<8x128xf32>, vector<8x128xf32> -> vector<8x128xf32>
    %300 = arith.addf %290, %299 : vector<8x128xf32>
    %c7_195 = arith.constant 7 : index
    %c0_196 = arith.constant 0 : index
    %c0_197 = arith.constant 0 : index
    %301 = vector.load %arg9[%c7_195, %c0_196, %c0_197] : memref<9x8x8xf32, #tpu.memory_space<vmem>>, vector<1x8x8xf32>
    %302 = vector.shape_cast %301 : vector<1x8x8xf32> to vector<8x8xf32>
    %c0_198 = arith.constant 0 : index
    %c136_199 = arith.constant 136 : index
    %303 = vector.load %arg18[%c0_198, %c136_199] : memref<16x384xf32, #tpu.memory_space<vmem>>, vector<8x128xf32>
    %cst_200 = arith.constant 0.000000e+00 : f32
    %304 = vector.shape_cast %6 : vector<1x128xi1> to vector<1x128xi1>
    %305 = vector.broadcast %304 : vector<1x128xi1> to vector<8x128xi1>
    %306 = vector.broadcast %cst_200 : f32 to vector<8x128xf32>
    %307 = arith.select %305, %303, %306 : vector<8x128xi1>, vector<8x128xf32>
    %cst_201 = arith.constant dense<0.000000e+00> : vector<8x128xf32>
    %308 = tpu.matmul %302, %307, %cst_201 {dimension_numbers = #tpu.dot_dimension_numbers<[1], [0], [0], [1], [0, 0, 1, 1], [], []>} : vector<8x8xf32>, vector<8x128xf32>, vector<8x128xf32> -> vector<8x128xf32>
    %309 = arith.addf %300, %308 : vector<8x128xf32>
    %c8_202 = arith.constant 8 : index
    %c0_203 = arith.constant 0 : index
    %c0_204 = arith.constant 0 : index
    %310 = vector.load %arg9[%c8_202, %c0_203, %c0_204] : memref<9x8x8xf32, #tpu.memory_space<vmem>>, vector<1x8x8xf32>
    %311 = vector.shape_cast %310 : vector<1x8x8xf32> to vector<8x8xf32>
    %c0_205 = arith.constant 0 : index
    %c137_206 = arith.constant 137 : index
    %312 = vector.load %arg18[%c0_205, %c137_206] : memref<16x384xf32, #tpu.memory_space<vmem>>, vector<8x128xf32>
    %313 = arith.andi %6, %12 : vector<1x128xi1>
    %cst_207 = arith.constant 0.000000e+00 : f32
    %314 = vector.shape_cast %313 : vector<1x128xi1> to vector<1x128xi1>
    %315 = vector.broadcast %314 : vector<1x128xi1> to vector<8x128xi1>
    %316 = vector.broadcast %cst_207 : f32 to vector<8x128xf32>
    %317 = arith.select %315, %312, %316 : vector<8x128xi1>, vector<8x128xf32>
    %cst_208 = arith.constant dense<0.000000e+00> : vector<8x128xf32>
    %318 = tpu.matmul %311, %317, %cst_208 {dimension_numbers = #tpu.dot_dimension_numbers<[1], [0], [0], [1], [0, 0, 1, 1], [], []>} : vector<8x8xf32>, vector<8x128xf32>, vector<8x128xf32> -> vector<8x128xf32>
    %319 = arith.addf %309, %318 : vector<8x128xf32>
    %c0_209 = arith.constant 0 : index
    %c0_210 = arith.constant 0 : index
    %320 = vector.load %arg10[%c0_209, %c0_210] : memref<8x1xf32, #tpu.memory_space<vmem>>, vector<8x1xf32>
    %321 = vector.broadcast %320 : vector<8x1xf32> to vector<8x128xf32>
    %322 = arith.addf %319, %321 : vector<8x128xf32>
    %323 = arith.addf %322, %154 : vector<8x128xf32>
    %cst_211 = arith.constant 0.000000e+00 : f32
    %324 = vector.broadcast %cst_211 : f32 to vector<8x128xf32>
    %325 = arith.maximumf %323, %324 : vector<8x128xf32>
    %c0_212 = arith.constant 0 : index
    %c0_213 = arith.constant 0 : index
    %326 = vector.load %arg13[%c0_212, %c0_213] : memref<8x8xf32, #tpu.memory_space<vmem>>, vector<8x8xf32>
    %cst_214 = arith.constant dense<0.000000e+00> : vector<8x128xf32>
    %327 = tpu.matmul %326, %325, %cst_214 {dimension_numbers = #tpu.dot_dimension_numbers<[1], [0], [0], [1], [0, 0, 1, 1], [], []>} : vector<8x8xf32>, vector<8x128xf32>, vector<8x128xf32> -> vector<8x128xf32>
    %c0_215 = arith.constant 0 : index
    %c0_216 = arith.constant 0 : index
    %328 = vector.load %arg14[%c0_215, %c0_216] : memref<8x8xf32, #tpu.memory_space<vmem>>, vector<8x8xf32>
    %cst_217 = arith.constant dense<0.000000e+00> : vector<8x128xf32>
    %329 = tpu.matmul %328, %154, %cst_217 {dimension_numbers = #tpu.dot_dimension_numbers<[1], [0], [0], [1], [0, 0, 1, 1], [], []>} : vector<8x8xf32>, vector<8x128xf32>, vector<8x128xf32> -> vector<8x128xf32>
    %330 = arith.addf %327, %329 : vector<8x128xf32>
    %c0_218 = arith.constant 0 : index
    %c0_219 = arith.constant 0 : index
    %331 = vector.load %arg15[%c0_218, %c0_219] : memref<8x4xf32, #tpu.memory_space<vmem>>, vector<8x4xf32>
    %cst_220 = arith.constant dense<0.000000e+00> : vector<8x128xf32>
    %332 = tpu.matmul %331, %22, %cst_220 {dimension_numbers = #tpu.dot_dimension_numbers<[1], [0], [0], [1], [0, 0, 1, 1], [], []>} : vector<8x4xf32>, vector<4x128xf32>, vector<8x128xf32> -> vector<8x128xf32>
    %333 = arith.addf %330, %332 : vector<8x128xf32>
    %c0_221 = arith.constant 0 : index
    %c0_222 = arith.constant 0 : index
    %334 = vector.load %arg16[%c0_221, %c0_222] : memref<8x1xf32, #tpu.memory_space<vmem>>, vector<8x1xf32>
    %335 = vector.broadcast %334 : vector<8x1xf32> to vector<8x128xf32>
    %336 = arith.addf %333, %335 : vector<8x128xf32>
    %cst_223 = arith.constant 0.000000e+00 : f32
    %337 = vector.broadcast %cst_223 : f32 to vector<8x128xf32>
    %338 = arith.maximumf %336, %337 : vector<8x128xf32>
    %c0_224 = arith.constant 0 : index
    %c0_225 = arith.constant 0 : index
    %c0_226 = arith.constant 0 : index
    %339 = vector.load %arg17[%c0_224, %c0_225, %c0_226] : memref<1x8x128xf32, #tpu.memory_space<vmem>>, vector<1x8x128xf32>
    %340 = vector.shape_cast %339 : vector<1x8x128xf32> to vector<8x128xf32>
    %341 = vector.shape_cast %338 : vector<8x128xf32> to vector<1x8x128xf32>
    tpu.vector_store %arg17[%c0_224, %c0_225, %c0_226], %341 {strides = array<i32>} : memref<1x8x128xf32, #tpu.memory_space<vmem>>, vector<1x8x128xf32>,
    return
  }
  func.func @transform_0(%arg0: i32) -> (i32, i32, i32) {
    %c0_i32 = arith.constant 0 : i32
    %c0_i32_0 = arith.constant 0 : i32
    %c0_i32_1 = arith.constant 0 : i32
    return %arg0, %c0_i32, %c0_i32_0 : i32, i32, i32
  }
  func.func @transform_1(%arg0: i32) -> (i32, i32) {
    %c0_i32 = arith.constant 0 : i32
    %c0_i32_0 = arith.constant 0 : i32
    %c0_i32_1 = arith.constant 0 : i32
    return %c0_i32, %c0_i32_0 : i32, i32
  }
  func.func @transform_2(%arg0: i32) -> (i32, i32) {
    %c0_i32 = arith.constant 0 : i32
    %c0_i32_0 = arith.constant 0 : i32
    %c0_i32_1 = arith.constant 0 : i32
    return %c0_i32, %c0_i32_0 : i32, i32
  }
  func.func @transform_3(%arg0: i32) -> (i32, i32) {
    %c0_i32 = arith.constant 0 : i32
    %c0_i32_0 = arith.constant 0 : i32
    %c0_i32_1 = arith.constant 0 : i32
    return %c0_i32, %c0_i32_0 : i32, i32
  }
  func.func @transform_4(%arg0: i32) -> (i32, i32, i32) {
    %c0_i32 = arith.constant 0 : i32
    %c0_i32_0 = arith.constant 0 : i32
    %c0_i32_1 = arith.constant 0 : i32
    %c0_i32_2 = arith.constant 0 : i32
    return %c0_i32, %c0_i32_0, %c0_i32_1 : i32, i32, i32
  }
  func.func @transform_5(%arg0: i32) -> (i32, i32) {
    %c0_i32 = arith.constant 0 : i32
    %c0_i32_0 = arith.constant 0 : i32
    %c0_i32_1 = arith.constant 0 : i32
    return %c0_i32, %c0_i32_0 : i32, i32
  }
  func.func @transform_6(%arg0: i32) -> (i32, i32, i32) {
    %c0_i32 = arith.constant 0 : i32
    %c0_i32_0 = arith.constant 0 : i32
    %c0_i32_1 = arith.constant 0 : i32
    %c0_i32_2 = arith.constant 0 : i32
    return %c0_i32, %c0_i32_0, %c0_i32_1 : i32, i32, i32
  }
  func.func @transform_7(%arg0: i32) -> (i32, i32) {
    %c0_i32 = arith.constant 0 : i32
    %c0_i32_0 = arith.constant 0 : i32
    %c0_i32_1 = arith.constant 0 : i32
    return %c0_i32, %c0_i32_0 : i32, i32
  }
  func.func @transform_8(%arg0: i32) -> (i32, i32, i32) {
    %c0_i32 = arith.constant 0 : i32
    %c0_i32_0 = arith.constant 0 : i32
    %c0_i32_1 = arith.constant 0 : i32
    %c0_i32_2 = arith.constant 0 : i32
    return %c0_i32, %c0_i32_0, %c0_i32_1 : i32, i32, i32
  }
  func.func @transform_9(%arg0: i32) -> (i32, i32) {
    %c0_i32 = arith.constant 0 : i32
    %c0_i32_0 = arith.constant 0 : i32
    %c0_i32_1 = arith.constant 0 : i32
    return %c0_i32, %c0_i32_0 : i32, i32
  }
  func.func @transform_10(%arg0: i32) -> (i32, i32) {
    %c0_i32 = arith.constant 0 : i32
    %c0_i32_0 = arith.constant 0 : i32
    %c0_i32_1 = arith.constant 0 : i32
    return %c0_i32, %c0_i32_0 : i32, i32
  }
  func.func @transform_11(%arg0: i32) -> (i32, i32) {
    %c0_i32 = arith.constant 0 : i32
    %c0_i32_0 = arith.constant 0 : i32
    %c0_i32_1 = arith.constant 0 : i32
    return %c0_i32, %c0_i32_0 : i32, i32
  }
  func.func @transform_12(%arg0: i32) -> (i32, i32) {
    %c0_i32 = arith.constant 0 : i32
    %c0_i32_0 = arith.constant 0 : i32
    %c0_i32_1 = arith.constant 0 : i32
    return %c0_i32, %c0_i32_0 : i32, i32
  }
  func.func @transform_13(%arg0: i32) -> (i32, i32) {
    %c0_i32 = arith.constant 0 : i32
    %c0_i32_0 = arith.constant 0 : i32
    %c0_i32_1 = arith.constant 0 : i32
    return %c0_i32, %c0_i32_0 : i32, i32
  }
  func.func @transform_14(%arg0: i32) -> (i32, i32) {
    %c0_i32 = arith.constant 0 : i32
    %c0_i32_0 = arith.constant 0 : i32
    %c0_i32_1 = arith.constant 0 : i32
    return %c0_i32, %c0_i32_0 : i32, i32
  }
  func.func @transform_15(%arg0: i32) -> (i32, i32) {
    %c0_i32 = arith.constant 0 : i32
    %c0_i32_0 = arith.constant 0 : i32
    %c0_i32_1 = arith.constant 0 : i32
    return %c0_i32, %c0_i32_0 : i32, i32
  }
  func.func @transform_16(%arg0: i32) -> (i32, i32, i32) {
    %c0_i32 = arith.constant 0 : i32
    %c0_i32_0 = arith.constant 0 : i32
    %c0_i32_1 = arith.constant 0 : i32
    return %arg0, %c0_i32, %c0_i32_0 : i32, i32, i32
  }
}

</mosaic_0001>

<llo_original>
// kernel: tpu_custom_call.1
$region0: #{tpu_custom_call.1}
  #allocation0 [shape = 'u32[]', space=smem, size = 0x4, offset = 0x4, fixed_abs, tag = 'smem constant byte address 0x4 - core index']
  #allocation1 [shape = 'u32[72,128]{1,0:T(1,128)}', space=vmem, size = 0x9000, scoped, tag = 'internal scratch']
  #allocation2 [shape = 'f32[16,384]{1,0:T(8,128)}', space=vmem, size = 0x6000, scoped, tag = 'scratch operand']
  %s0 = inlined_call_operand.vmem [shape: f32[1,16,128], index: 0, kind: input, shape index: {}]
  %s1 = inlined_call_operand.vmem [shape: s32[4,128], index: 1, kind: input, shape index: {}]
  %s2 = inlined_call_operand.vmem [shape: f32[8,36], index: 2, kind: input, shape index: {}]
  %s3 = inlined_call_operand.vmem [shape: f32[8,1], index: 3, kind: input, shape index: {}]
  %s4 = inlined_call_operand.vmem [shape: f32[9,8,8], index: 4, kind: input, shape index: {}]
  %s5 = inlined_call_operand.vmem [shape: f32[8,1], index: 5, kind: input, shape index: {}]
  %s6 = inlined_call_operand.vmem [shape: f32[9,8,8], index: 6, kind: input, shape index: {}]
  %s7 = inlined_call_operand.vmem [shape: f32[8,1], index: 7, kind: input, shape index: {}]
  %s8 = inlined_call_operand.vmem [shape: f32[9,8,8], index: 8, kind: input, shape index: {}]
  %s9 = inlined_call_operand.vmem [shape: f32[8,1], index: 9, kind: input, shape index: {}]
  %s10 = inlined_call_operand.vmem [shape: f32[8,4], index: 10, kind: input, shape index: {}]
  %s11 = inlined_call_operand.vmem [shape: f32[8,1], index: 11, kind: input, shape index: {}]
  %s12 = inlined_call_operand.vmem [shape: f32[8,8], index: 12, kind: input, shape index: {}]
  %s13 = inlined_call_operand.vmem [shape: f32[8,8], index: 13, kind: input, shape index: {}]
  %s14 = inlined_call_operand.vmem [shape: f32[8,4], index: 14, kind: input, shape index: {}]
  %s15 = inlined_call_operand.vmem [shape: f32[8,1], index: 15, kind: input, shape index: {}]
  %s16 = inlined_call_operand.hbm [shape: f32[1,8,128], index: 16, kind: output, shape index: {}]
  %s17 = sld [smem:[#allocation0]]
  $region74: #{tpu_custom_call.1} parent=0
    _
  %s19 = ssub.s32 1, %s17
  %s20 = scalar_select 0, %s19, %s17
  $region1: #{tpu_custom_call.1} parent=0
    #allocation3 [shape = 'u8[4096]{0}', space=vmem, size = 0x1000, scoped, tag = 'output window, operand 0, single buffered']
    #allocation4 [shape = 's32[1]{0}', space=sflag, size = 0x4, scoped, tag = 'scoped memory for tpu_custom_call.1']
    %21 = vsyncpa [#allocation4], 0
    // Predicated region
    $region2: #{tpu_custom_call.1} parent=1 // pred_check
      _
    $region3: #{tpu_custom_call.1} parent=1 // pred_check_branch
      %23 = sbr.rel (0) target = $region5
    $region4: #{tpu_custom_call.1} parent=1 // pred_region
      _
    $region5: #{tpu_custom_call.1} parent=1 // pred_fallthru
      _
    // Predicated region
    $region6: #{tpu_custom_call.1} parent=1 // pred_check
      _
    $region7: #{tpu_custom_call.1} parent=1 // pred_check_branch
      %25 = sbr.rel (0) target = $region9
    $region8: #{tpu_custom_call.1} parent=1 // pred_region
      _
    $region9: #{tpu_custom_call.1} parent=1 // pred_fallthru
      _
    // Predicated region
    $region10: #{tpu_custom_call.1} parent=1 // pred_check
      _
    $region11: #{tpu_custom_call.1} parent=1 // pred_check_branch
      %27 = sbr.rel (0) target = $region13
    $region12: #{tpu_custom_call.1} parent=1 // pred_region
      _
    $region13: #{tpu_custom_call.1} parent=1 // pred_fallthru
      _
    // Predicated region
    $region14: #{tpu_custom_call.1} parent=1 // pred_check
      _
    $region15: #{tpu_custom_call.1} parent=1 // pred_check_branch
      %29 = sbr.rel (0) target = $region17
    $region16: #{tpu_custom_call.1} parent=1 // pred_region
      _
    $region17: #{tpu_custom_call.1} parent=1 // pred_fallthru
      _
    // Predicated region
    $region18: #{tpu_custom_call.1} parent=1 // pred_check
      _
    $region19: #{tpu_custom_call.1} parent=1 // pred_check_branch
      %31 = sbr.rel (0) target = $region21
    $region20: #{tpu_custom_call.1} parent=1 // pred_region
      _
    $region21: #{tpu_custom_call.1} parent=1 // pred_fallthru
      _
    // Predicated region
    $region22: #{tpu_custom_call.1} parent=1 // pred_check
      _
    $region23: #{tpu_custom_call.1} parent=1 // pred_check_branch
      %33 = sbr.rel (0) target = $region25
    $region24: #{tpu_custom_call.1} parent=1 // pred_region
      _
    $region25: #{tpu_custom_call.1} parent=1 // pred_fallthru
      _
    // Predicated region
    $region26: #{tpu_custom_call.1} parent=1 // pred_check
      _
    $region27: #{tpu_custom_call.1} parent=1 // pred_check_branch
      %35 = sbr.rel (0) target = $region29
    $region28: #{tpu_custom_call.1} parent=1 // pred_region
      _
    $region29: #{tpu_custom_call.1} parent=1 // pred_fallthru
      _
    // Predicated region
    $region30: #{tpu_custom_call.1} parent=1 // pred_check
      _
    $region31: #{tpu_custom_call.1} parent=1 // pred_check_branch
      %37 = sbr.rel (0) target = $region33
    $region32: #{tpu_custom_call.1} parent=1 // pred_region
      _
    $region33: #{tpu_custom_call.1} parent=1 // pred_fallthru
      _
    // Predicated region
    $region34: #{tpu_custom_call.1} parent=1 // pred_check
      _
    $region35: #{tpu_custom_call.1} parent=1 // pred_check_branch
      %39 = sbr.rel (0) target = $region37
    $region36: #{tpu_custom_call.1} parent=1 // pred_region
      _
    $region37: #{tpu_custom_call.1} parent=1 // pred_fallthru
      _
    // Predicated region
    $region38: #{tpu_custom_call.1} parent=1 // pred_check
      _
    $region39: #{tpu_custom_call.1} parent=1 // pred_check_branch
      %41 = sbr.rel (0) target = $region41
    $region40: #{tpu_custom_call.1} parent=1 // pred_region
      _
    $region41: #{tpu_custom_call.1} parent=1 // pred_fallthru
      _
    // Predicated region
    $region42: #{tpu_custom_call.1} parent=1 // pred_check
      _
    $region43: #{tpu_custom_call.1} parent=1 // pred_check_branch
      %43 = sbr.rel (0) target = $region45
    $region44: #{tpu_custom_call.1} parent=1 // pred_region
      _
    $region45: #{tpu_custom_call.1} parent=1 // pred_fallthru
      _
    // Predicated region
    $region46: #{tpu_custom_call.1} parent=1 // pred_check
      _
    $region47: #{tpu_custom_call.1} parent=1 // pred_check_branch
      %45 = sbr.rel (0) target = $region49
    $region48: #{tpu_custom_call.1} parent=1 // pred_region
      _
    $region49: #{tpu_custom_call.1} parent=1 // pred_fallthru
      _
    // Predicated region
    $region50: #{tpu_custom_call.1} parent=1 // pred_check
      _
    $region51: #{tpu_custom_call.1} parent=1 // pred_check_branch
      %47 = sbr.rel (0) target = $region53
    $region52: #{tpu_custom_call.1} parent=1 // pred_region
      _
    $region53: #{tpu_custom_call.1} parent=1 // pred_fallthru
      _
    // Predicated region
    $region54: #{tpu_custom_call.1} parent=1 // pred_check
      _
    $region55: #{tpu_custom_call.1} parent=1 // pred_check_branch
      %49 = sbr.rel (0) target = $region57
    $region56: #{tpu_custom_call.1} parent=1 // pred_region
      _
    $region57: #{tpu_custom_call.1} parent=1 // pred_fallthru
      _
    // Predicated region
    $region58: #{tpu_custom_call.1} parent=1 // pred_check
      _
    $region59: #{tpu_custom_call.1} parent=1 // pred_check_branch
      %51 = sbr.rel (0) target = $region61
    $region60: #{tpu_custom_call.1} parent=1 // pred_region
      _
    $region61: #{tpu_custom_call.1} parent=1 // pred_fallthru
      _
    // Predicated region
    $region62: #{tpu_custom_call.1} parent=1 // pred_check
      _
    $region63: #{tpu_custom_call.1} parent=1 // pred_check_branch
      %53 = sbr.rel (0) target = $region65
    $region64: #{tpu_custom_call.1} parent=1 // pred_region
      _
    $region65: #{tpu_custom_call.1} parent=1 // pred_fallthru
      _
    %v54 = vld [vmem:[%s1] sm:$0xf]
    %vm55 = vcmp.gt.s32.totalorder %v54, 0
    %v56 = vld [vmem:[%s0] sm:$0xff]
    %v57 = vld [vmem:[%s0 + $0x8] sm:$0xff]
    %58 = vst [vmem:[#allocation2 + $0x8] sm:$0xff] %v56
    %59 = vst [vmem:[#allocation2 + $0x20] sm:$0xff] %v57
    %v61 = vrot.slane %v56, 4
    %v63 = vmax.f32 %v56, %v61
    %v65 = vrot.slane %v57, 4
    %v67 = vmax.f32 %v57, %v65
    %v68 = vmax.f32 %v63, %v67
    %v69 = vld [vmem:[%s10] sm:$0xff]
    %v70 = vld [vmem:[%s11] sm:$0xff]
    %72 = vset.pattern.permute.xlu0 0
    %73 = vperm.xlu0 %72, %v70
    %v74 = vpop.permute.xlu0 %73
    %vm76 = vcmask 31744
    %v78 = vsel %vm76, %v69, 0
    %vm80 = vcmask 1043456
    %v82 = vsel %vm80, %v68, 0
    %84 = vmatpush.msra.mxu0 0.0
    %85 = vmatpush.msra.mxu0 0.0
    %86 = vmatpush.msra.mxu0 0.0
    %87 = vmatpush.msra.mxu0 0.0
    %88 = vmatpush.msra.mxu0 0.0
    %89 = vmatpush.msra.mxu0 0.0
    %90 = vmatpush.msra.mxu0 0.0
    %91 = vmatpush.msra.mxu0 0.0
    %92 = vmatpush.msra.mxu0 0.0
    %93 = vmatpush.msra.mxu0 0.0
    %94 = vmatpush.msra.mxu0 0.0
    %95 = vmatpush.msra.mxu0 0.0
    %96 = vmatpush.msra.mxu0 0.0
    %97 = vmatpush.msra.mxu0 0.0
    %98 = vmatpush.msra.mxu0 0.0
    %99 = vmatpush.msra.mxu0 %v82
    %100 = vmatmul.f32.gmra.mxu0 %v78
    %v101 = vpop.f32.mrf.mxu0
    %v102 = vadd.f32 %v74, %v101
    %103 = vdwg.mxu0
    %v104 = vld [vmem:[%s2] sm:$0xff]
    %v105 = vld [vmem:[#allocation2 + $0x18] sm:$0xff]
    %v106 = vld [vmem:[#allocation2 + $0x20] sm:$0xff]
    %v107 = vsel %vm55, 1, 0
    %v108 = vperm.slane %v107, 0
    %vm109 = vcmp.eq.s32.totalorder %v108, 1
    %112 = vrot.lane.b32.xlu0 %v105, 8
    %v113 = vpop.permute.xlu0 %112
    %114 = vrot.lane.b32.xlu0 %v106, 8
    %v115 = vpop.permute.xlu0 %114
    %vm116 = vcmask 64512
    %v117 = vsel %vm116, %v113, %v115
    %v119 = vsel %vm109, %v117, 0.0
    %121 = vrot.lane.b32.xlu0 %v104, 112
    %v122 = vpop.permute.xlu0 %121
    %v123 = vsel %vm116, %v122, 0
    %125 = vmatpush.msra.mxu0 0.0
    %126 = vmatpush.msra.mxu0 0.0
    %127 = vmatpush.msra.mxu0 0.0
    %128 = vmatpush.msra.mxu0 0.0
    %129 = vmatpush.msra.mxu0 0.0
    %130 = vmatpush.msra.mxu0 0.0
    %131 = vmatpush.msra.mxu0 0.0
    %132 = vmatpush.msra.mxu0 0.0
    %133 = vmatpush.msra.mxu0 0.0
    %134 = vmatpush.msra.mxu0 0.0
    %135 = vmatpush.msra.mxu0 0.0
    %136 = vmatpush.msra.mxu0 0.0
    %137 = vmatpush.msra.mxu0 0.0
    %138 = vmatpush.msra.mxu0 0.0
    %139 = vmatpush.msra.mxu0 0.0
    %140 = vmatpush.msra.mxu0 %v119
    %141 = vmatmul.f32.gmra.mxu0 %v123
    %v142 = vpop.f32.mrf.mxu0
    %v143 = vadd.f32 0.0, %v142
    %144 = vdwg.mxu0
    %vm145 = vcmask 130048
    %v146 = vsel %vm145, %v104, 0
    %148 = vmatpush.msra.mxu0 0.0
    %149 = vmatpush.msra.mxu0 0.0
    %150 = vmatpush.msra.mxu0 0.0
    %151 = vmatpush.msra.mxu0 0.0
    %152 = vmatpush.msra.mxu0 0.0
    %153 = vmatpush.msra.mxu0 0.0
    %154 = vmatpush.msra.mxu0 0.0
    %155 = vmatpush.msra.mxu0 0.0
    %156 = vmatpush.msra.mxu0 0.0
    %157 = vmatpush.msra.mxu0 0.0
    %158 = vmatpush.msra.mxu0 0.0
    %159 = vmatpush.msra.mxu0 0.0
    %160 = vmatpush.msra.mxu0 0.0
    %161 = vmatpush.msra.mxu0 0.0
    %162 = vmatpush.msra.mxu0 %v57
    %163 = vmatpush.msra.mxu0 %v56
    %164 = vmatmul.f32.gmra.mxu0 %v146
    %v165 = vpop.f32.mrf.mxu0
    %v166 = vadd.f32 %v143, %v165
    %167 = vdwg.mxu0
    %v168 = vld [vmem:[#allocation2] sm:$0xf0]
    %v169 = vld [vmem:[#allocation2 + $0x8] sm:$0xf0]
    %v170 = vperm.slane %v107, 2
    %vm171 = vcmp.eq.s32.totalorder %v170, 1
    %v174 = vrot.slane %v168, 4
    %v175 = vrot.slane %v169, 4
    %176 = vrot.lane.b32.xlu0 %v174, 1
    %v177 = vpop.permute.xlu0 %176
    %178 = vrot.lane.b32.xlu0 %v175, 1
    %v179 = vpop.permute.xlu0 %178
    %vm180 = vcmask 7168
    %v181 = vsel %vm180, %v177, %v179
    %v183 = vsel %vm171, %v181, 0.0
    %184 = vrot.lane.b32.xlu0 %v104, 104
    %v185 = vpop.permute.xlu0 %184
    %v186 = vsel %vm76, %v185, 0
    %v189 = vsel %vm80, %v183, 0
    %191 = vmatpush.msra.mxu0 0.0
    %192 = vmatpush.msra.mxu0 0.0
    %193 = vmatpush.msra.mxu0 0.0
    %194 = vmatpush.msra.mxu0 0.0
    %195 = vmatpush.msra.mxu0 0.0
    %196 = vmatpush.msra.mxu0 0.0
    %197 = vmatpush.msra.mxu0 0.0
    %198 = vmatpush.msra.mxu0 0.0
    %199 = vmatpush.msra.mxu0 0.0
    %200 = vmatpush.msra.mxu0 0.0
    %201 = vmatpush.msra.mxu0 0.0
    %202 = vmatpush.msra.mxu0 0.0
    %203 = vmatpush.msra.mxu0 0.0
    %204 = vmatpush.msra.mxu0 0.0
    %205 = vmatpush.msra.mxu0 0.0
    %206 = vmatpush.msra.mxu0 %v189
    %207 = vmatmul.f32.gmra.mxu0 %v186
    %v208 = vpop.f32.mrf.mxu0
    %v209 = vadd.f32 0.0, %v208
    %210 = vdwg.mxu0
    %v211 = vadd.f32 %v166, %v209
    %v212 = vld [vmem:[#allocation2 + $0x18] sm:$0xf0]
    %v213 = vld [vmem:[#allocation2 + $0x20] sm:$0xf0]
    %v216 = vrot.slane %v212, 4
    %v217 = vrot.slane %v213, 4
    %218 = vrot.lane.b32.xlu0 %v216, 1
    %v219 = vpop.permute.xlu0 %218
    %220 = vrot.lane.b32.xlu0 %v217, 1
    %v221 = vpop.permute.xlu0 %220
    %v222 = vsel %vm180, %v219, %v221
    %v224 = vsel %vm171, %v222, 0.0
    %225 = vrot.lane.b32.xlu0 %v104, 100
    %v226 = vpop.permute.xlu0 %225
    %v227 = vsel %vm76, %v226, 0
    %v230 = vsel %vm80, %v224, 0
    %232 = vmatpush.msra.mxu0 0.0
    %233 = vmatpush.msra.mxu0 0.0
    %234 = vmatpush.msra.mxu0 0.0
    %235 = vmatpush.msra.mxu0 0.0
    %236 = vmatpush.msra.mxu0 0.0
    %237 = vmatpush.msra.mxu0 0.0
    %238 = vmatpush.msra.mxu0 0.0
    %239 = vmatpush.msra.mxu0 0.0
    %240 = vmatpush.msra.mxu0 0.0
    %241 = vmatpush.msra.mxu0 0.0
    %242 = vmatpush.msra.mxu0 0.0
    %243 = vmatpush.msra.mxu0 0.0
    %244 = vmatpush.msra.mxu0 0.0
    %245 = vmatpush.msra.mxu0 0.0
    %246 = vmatpush.msra.mxu0 0.0
    %247 = vmatpush.msra.mxu0 %v230
    %248 = vmatmul.f32.gmra.mxu0 %v227
    %v249 = vpop.f32.mrf.mxu0
    %v250 = vadd.f32 0.0, %v249
    %251 = vdwg.mxu0
    %v252 = vadd.f32 %v211, %v250
    %v253 = vrot.slane %v107, 2
    %vm254 = vcmp.ne.s32.totalorder %v253, 0
    %vm255 = vmand %vm55, %vm254
    %v256 = vsel %vm255, 1, 0
    %v257 = vperm.slane %v256, 0
    %vm258 = vcmp.eq.s32.totalorder %v257, 1
    %259 = vrot.lane.b32.xlu0 %v216, 9
    %v260 = vpop.permute.xlu0 %259
    %261 = vrot.lane.b32.xlu0 %v217, 9
    %v262 = vpop.permute.xlu0 %261
    %vm263 = vcmask 72704
    %v264 = vsel %vm263, %v260, %v262
    %v266 = vsel %vm258, %v264, 0.0
    %267 = vrot.lane.b32.xlu0 %v104, 96
    %v268 = vpop.permute.xlu0 %267
    %v269 = vsel %vm76, %v268, 0
    %v272 = vsel %vm80, %v266, 0
    %274 = vmatpush.msra.mxu0 0.0
    %275 = vmatpush.msra.mxu0 0.0
    %276 = vmatpush.msra.mxu0 0.0
    %277 = vmatpush.msra.mxu0 0.0
    %278 = vmatpush.msra.mxu0 0.0
    %279 = vmatpush.msra.mxu0 0.0
    %280 = vmatpush.msra.mxu0 0.0
    %281 = vmatpush.msra.mxu0 0.0
    %282 = vmatpush.msra.mxu0 0.0
    %283 = vmatpush.msra.mxu0 0.0
    %284 = vmatpush.msra.mxu0 0.0
    %285 = vmatpush.msra.mxu0 0.0
    %286 = vmatpush.msra.mxu0 0.0
    %287 = vmatpush.msra.mxu0 0.0
    %288 = vmatpush.msra.mxu0 0.0
    %289 = vmatpush.msra.mxu0 %v272
    %290 = vmatmul.f32.gmra.mxu0 %v269
    %v291 = vpop.f32.mrf.mxu0
    %v292 = vadd.f32 0.0, %v291
    %293 = vdwg.mxu0
    %v294 = vadd.f32 %v252, %v292
    %v295 = vld [vmem:[%s3] sm:$0xff]
    %297 = vset.pattern.permute.xlu0 0
    %298 = vperm.xlu0 %297, %v295
    %v299 = vpop.permute.xlu0 %298
    %v301 = vadd.f32 %v294, %v299
    %v302 = vmax.f32 %v301, 0.0
    %303 = vst [vmem:[#allocation2 + $0x8] sm:$0xff] %v302
    %s304 = scalar_lea.vmem %s4, 32
    %v305 = vld [vmem:[%s304] sm:$0xff]
    %v306 = vld [vmem:[%s4] sm:$0xff]
    %v307 = vld [vmem:[#allocation2] sm:$0xff]
    %v308 = vld [vmem:[#allocation2 + $0x8] sm:$0xff]
    %311 = vrot.lane.b32.xlu0 %v307, 9
    %v312 = vpop.permute.xlu0 %311
    %313 = vrot.lane.b32.xlu0 %v308, 9
    %v314 = vpop.permute.xlu0 %313
    %v315 = vsel %vm263, %v312, %v314
    %v317 = vsel %vm258, %v315, 0.0
    %v319 = vsel %vm116, %v306, 0
    %321 = vmatpush.msra.mxu0 0.0
    %322 = vmatpush.msra.mxu0 0.0
    %323 = vmatpush.msra.mxu0 0.0
    %324 = vmatpush.msra.mxu0 0.0
    %325 = vmatpush.msra.mxu0 0.0
    %326 = vmatpush.msra.mxu0 0.0
    %327 = vmatpush.msra.mxu0 0.0
    %328 = vmatpush.msra.mxu0 0.0
    %329 = vmatpush.msra.mxu0 0.0
    %330 = vmatpush.msra.mxu0 0.0
    %331 = vmatpush.msra.mxu0 0.0
    %332 = vmatpush.msra.mxu0 0.0
    %333 = vmatpush.msra.mxu0 0.0
    %334 = vmatpush.msra.mxu0 0.0
    %335 = vmatpush.msra.mxu0 0.0
    %336 = vmatpush.msra.mxu0 %v317
    %337 = vmatmul.f32.gmra.mxu0 %v319
    %v338 = vpop.f32.mrf.mxu0
    %v339 = vadd.f32 0.0, %v338
    %340 = vdwg.mxu0
    %v342 = vsel %vm116, %v305, 0
    %344 = vmatpush.msra.mxu0 0.0
    %345 = vmatpush.msra.mxu0 0.0
    %346 = vmatpush.msra.mxu0 0.0
    %347 = vmatpush.msra.mxu0 0.0
    %348 = vmatpush.msra.mxu0 0.0
    %349 = vmatpush.msra.mxu0 0.0
    %350 = vmatpush.msra.mxu0 0.0
    %351 = vmatpush.msra.mxu0 0.0
    %352 = vmatpush.msra.mxu0 0.0
    %353 = vmatpush.msra.mxu0 0.0
    %354 = vmatpush.msra.mxu0 0.0
    %355 = vmatpush.msra.mxu0 0.0
    %356 = vmatpush.msra.mxu0 0.0
    %357 = vmatpush.msra.mxu0 0.0
    %358 = vmatpush.msra.mxu0 0.0
    %359 = vmatpush.msra.mxu0 %v302
    %360 = vmatmul.f32.gmra.mxu0 %v342
    %v361 = vpop.f32.mrf.mxu0
    %v362 = vadd.f32 %v339, %v361
    %363 = vdwg.mxu0
    %s364 = scalar_lea.vmem %s4, 8
    %v365 = vld [vmem:[%s364] sm:$0xff]
    %366 = vrot.lane.b32.xlu0 %v307, 8
    %v367 = vpop.permute.xlu0 %366
    %368 = vrot.lane.b32.xlu0 %v308, 8
    %v369 = vpop.permute.xlu0 %368
    %v370 = vsel %vm116, %v367, %v369
    %v372 = vsel %vm109, %v370, 0.0
    %v374 = vsel %vm116, %v365, 0
    %376 = vmatpush.msra.mxu0 0.0
    %377 = vmatpush.msra.mxu0 0.0
    %378 = vmatpush.msra.mxu0 0.0
    %379 = vmatpush.msra.mxu0 0.0
    %380 = vmatpush.msra.mxu0 0.0
    %381 = vmatpush.msra.mxu0 0.0
    %382 = vmatpush.msra.mxu0 0.0
    %383 = vmatpush.msra.mxu0 0.0
    %384 = vmatpush.msra.mxu0 0.0
    %385 = vmatpush.msra.mxu0 0.0
    %386 = vmatpush.msra.mxu0 0.0
    %387 = vmatpush.msra.mxu0 0.0
    %388 = vmatpush.msra.mxu0 0.0
    %389 = vmatpush.msra.mxu0 0.0
    %390 = vmatpush.msra.mxu0 0.0
    %391 = vmatpush.msra.mxu0 %v372
    %392 = vmatmul.f32.gmra.mxu0 %v374
    %v393 = vpop.f32.mrf.mxu0
    %v394 = vadd.f32 0.0, %v393
    %395 = vdwg.mxu0
    %v396 = vadd.f32 %v362, %v394
    %s397 = scalar_lea.vmem %s4, 16
    %v398 = vld [vmem:[%s397] sm:$0xff]
    %v399 = vrot.slane %v107, 3
    %vm400 = vcmp.ne.s32.totalorder %v399, 0
    %vm401 = vmand %vm55, %vm400
    %v402 = vsel %vm401, 1, 0
    %v403 = vperm.slane %v402, 0
    %vm404 = vcmp.eq.s32.totalorder %v403, 1
    %405 = vrot.lane.b32.xlu0 %v307, 7
    %v406 = vpop.permute.xlu0 %405
    %407 = vrot.lane.b32.xlu0 %v308, 7
    %v408 = vpop.permute.xlu0 %407
    %vm409 = vcmask 56320
    %v410 = vsel %vm409, %v406, %v408
    %v412 = vsel %vm404, %v410, 0.0
    %v414 = vsel %vm116, %v398, 0
    %416 = vmatpush.msra.mxu0 0.0
    %417 = vmatpush.msra.mxu0 0.0
    %418 = vmatpush.msra.mxu0 0.0
    %419 = vmatpush.msra.mxu0 0.0
    %420 = vmatpush.msra.mxu0 0.0
    %421 = vmatpush.msra.mxu0 0.0
    %422 = vmatpush.msra.mxu0 0.0
    %423 = vmatpush.msra.mxu0 0.0
    %424 = vmatpush.msra.mxu0 0.0
    %425 = vmatpush.msra.mxu0 0.0
    %426 = vmatpush.msra.mxu0 0.0
    %427 = vmatpush.msra.mxu0 0.0
    %428 = vmatpush.msra.mxu0 0.0
    %429 = vmatpush.msra.mxu0 0.0
    %430 = vmatpush.msra.mxu0 0.0
    %431 = vmatpush.msra.mxu0 %v412
    %432 = vmatmul.f32.gmra.mxu0 %v414
    %v433 = vpop.f32.mrf.mxu0
    %v434 = vadd.f32 0.0, %v433
    %435 = vdwg.mxu0
    %v436 = vadd.f32 %v396, %v434
    %s437 = scalar_lea.vmem %s4, 24
    %v438 = vld [vmem:[%s437] sm:$0xff]
    %439 = vrot.lane.b32.xlu0 %v307, 1
    %v440 = vpop.permute.xlu0 %439
    %441 = vrot.lane.b32.xlu0 %v308, 1
    %v442 = vpop.permute.xlu0 %441
    %v443 = vsel %vm180, %v440, %v442
    %v445 = vsel %vm171, %v443, 0.0
    %v447 = vsel %vm116, %v438, 0
    %449 = vmatpush.msra.mxu0 0.0
    %450 = vmatpush.msra.mxu0 0.0
    %451 = vmatpush.msra.mxu0 0.0
    %452 = vmatpush.msra.mxu0 0.0
    %453 = vmatpush.msra.mxu0 0.0
    %454 = vmatpush.msra.mxu0 0.0
    %455 = vmatpush.msra.mxu0 0.0
    %456 = vmatpush.msra.mxu0 0.0
    %457 = vmatpush.msra.mxu0 0.0
    %458 = vmatpush.msra.mxu0 0.0
    %459 = vmatpush.msra.mxu0 0.0
    %460 = vmatpush.msra.mxu0 0.0
    %461 = vmatpush.msra.mxu0 0.0
    %462 = vmatpush.msra.mxu0 0.0
    %463 = vmatpush.msra.mxu0 0.0
    %464 = vmatpush.msra.mxu0 %v445
    %465 = vmatmul.f32.gmra.mxu0 %v447
    %v466 = vpop.f32.mrf.mxu0
    %v467 = vadd.f32 0.0, %v466
    %468 = vdwg.mxu0
    %v469 = vadd.f32 %v436, %v467
    %s470 = scalar_lea.vmem %s4, 40
    %v471 = vld [vmem:[%s470] sm:$0xff]
    %v472 = vld [vmem:[#allocation2 + $0x8] sm:$0xff]
    %v473 = vld [vmem:[#allocation2 + $0x10] sm:$0xff]
    %v474 = vperm.slane %v107, 3
    %vm475 = vcmp.eq.s32.totalorder %v474, 1
    %478 = vrot.lane.b32.xlu0 %v472, 127
    %v479 = vpop.permute.xlu0 %478
    %480 = vrot.lane.b32.xlu0 %v473, 127
    %v481 = vpop.permute.xlu0 %480
    %vm482 = vcmask 1039360
    %v483 = vsel %vm482, %v479, %v481
    %v485 = vsel %vm475, %v483, 0.0
    %v487 = vsel %vm116, %v471, 0
    %489 = vmatpush.msra.mxu0 0.0
    %490 = vmatpush.msra.mxu0 0.0
    %491 = vmatpush.msra.mxu0 0.0
    %492 = vmatpush.msra.mxu0 0.0
    %493 = vmatpush.msra.mxu0 0.0
    %494 = vmatpush.msra.mxu0 0.0
    %495 = vmatpush.msra.mxu0 0.0
    %496 = vmatpush.msra.mxu0 0.0
    %497 = vmatpush.msra.mxu0 0.0
    %498 = vmatpush.msra.mxu0 0.0
    %499 = vmatpush.msra.mxu0 0.0
    %500 = vmatpush.msra.mxu0 0.0
    %501 = vmatpush.msra.mxu0 0.0
    %502 = vmatpush.msra.mxu0 0.0
    %503 = vmatpush.msra.mxu0 0.0
    %504 = vmatpush.msra.mxu0 %v485
    %505 = vmatmul.f32.gmra.mxu0 %v487
    %v506 = vpop.f32.mrf.mxu0
    %v507 = vadd.f32 0.0, %v506
    %508 = vdwg.mxu0
    %v509 = vadd.f32 %v469, %v507
    %s510 = scalar_lea.vmem %s4, 48
    %v511 = vld [vmem:[%s510] sm:$0xff]
    %v512 = vrot.slane %v107, 1
    %vm513 = vcmp.ne.s32.totalorder %v512, 0
    %vm514 = vmand %vm55, %vm513
    %v515 = vsel %vm514, 1, 0
    %v516 = vperm.slane %v515, 1
    %vm517 = vcmp.eq.s32.totalorder %v516, 1
    %518 = vrot.lane.b32.xlu0 %v472, 121
    %v519 = vpop.permute.xlu0 %518
    %520 = vrot.lane.b32.xlu0 %v473, 121
    %v521 = vpop.permute.xlu0 %520
    %vm522 = vcmask 990208
    %v523 = vsel %vm522, %v519, %v521
    %v525 = vsel %vm517, %v523, 0.0
    %v527 = vsel %vm116, %v511, 0
    %529 = vmatpush.msra.mxu0 0.0
    %530 = vmatpush.msra.mxu0 0.0
    %531 = vmatpush.msra.mxu0 0.0
    %532 = vmatpush.msra.mxu0 0.0
    %533 = vmatpush.msra.mxu0 0.0
    %534 = vmatpush.msra.mxu0 0.0
    %535 = vmatpush.msra.mxu0 0.0
    %536 = vmatpush.msra.mxu0 0.0
    %537 = vmatpush.msra.mxu0 0.0
    %538 = vmatpush.msra.mxu0 0.0
    %539 = vmatpush.msra.mxu0 0.0
    %540 = vmatpush.msra.mxu0 0.0
    %541 = vmatpush.msra.mxu0 0.0
    %542 = vmatpush.msra.mxu0 0.0
    %543 = vmatpush.msra.mxu0 0.0
    %544 = vmatpush.msra.mxu0 %v525
    %545 = vmatmul.f32.gmra.mxu0 %v527
    %v546 = vpop.f32.mrf.mxu0
    %v547 = vadd.f32 0.0, %v546
    %548 = vdwg.mxu0
    %v549 = vadd.f32 %v509, %v547
    %s550 = scalar_lea.vmem %s4, 56
    %v551 = vld [vmem:[%s550] sm:$0xff]
    %v552 = vperm.slane %v107, 1
    %vm553 = vcmp.eq.s32.totalorder %v552, 1
    %554 = vrot.lane.b32.xlu0 %v472, 120
    %v555 = vpop.permute.xlu0 %554
    %556 = vrot.lane.b32.xlu0 %v473, 120
    %v557 = vpop.permute.xlu0 %556
    %vm558 = vcmask 982016
    %v559 = vsel %vm558, %v555, %v557
    %v561 = vsel %vm553, %v559, 0.0
    %v563 = vsel %vm116, %v551, 0
    %565 = vmatpush.msra.mxu0 0.0
    %566 = vmatpush.msra.mxu0 0.0
    %567 = vmatpush.msra.mxu0 0.0
    %568 = vmatpush.msra.mxu0 0.0
    %569 = vmatpush.msra.mxu0 0.0
    %570 = vmatpush.msra.mxu0 0.0
    %571 = vmatpush.msra.mxu0 0.0
    %572 = vmatpush.msra.mxu0 0.0
    %573 = vmatpush.msra.mxu0 0.0
    %574 = vmatpush.msra.mxu0 0.0
    %575 = vmatpush.msra.mxu0 0.0
    %576 = vmatpush.msra.mxu0 0.0
    %577 = vmatpush.msra.mxu0 0.0
    %578 = vmatpush.msra.mxu0 0.0
    %579 = vmatpush.msra.mxu0 0.0
    %580 = vmatpush.msra.mxu0 %v561
    %581 = vmatmul.f32.gmra.mxu0 %v563
    %v582 = vpop.f32.mrf.mxu0
    %v583 = vadd.f32 0.0, %v582
    %584 = vdwg.mxu0
    %v585 = vadd.f32 %v549, %v583
    %s586 = scalar_lea.vmem %s4, 64
    %v587 = vld [vmem:[%s586] sm:$0xff]
    %v588 = vperm.slane %v256, 1
    %vm589 = vcmp.eq.s32.totalorder %v588, 1
    %590 = vrot.lane.b32.xlu0 %v472, 119
    %v591 = vpop.permute.xlu0 %590
    %592 = vrot.lane.b32.xlu0 %v473, 119
    %v593 = vpop.permute.xlu0 %592
    %vm594 = vcmask 973824
    %v595 = vsel %vm594, %v591, %v593
    %v597 = vsel %vm589, %v595, 0.0
    %v599 = vsel %vm116, %v587, 0
    %601 = vmatpush.msra.mxu0 0.0
    %602 = vmatpush.msra.mxu0 0.0
    %603 = vmatpush.msra.mxu0 0.0
    %604 = vmatpush.msra.mxu0 0.0
    %605 = vmatpush.msra.mxu0 0.0
    %606 = vmatpush.msra.mxu0 0.0
    %607 = vmatpush.msra.mxu0 0.0
    %608 = vmatpush.msra.mxu0 0.0
    %609 = vmatpush.msra.mxu0 0.0
    %610 = vmatpush.msra.mxu0 0.0
    %611 = vmatpush.msra.mxu0 0.0
    %612 = vmatpush.msra.mxu0 0.0
    %613 = vmatpush.msra.mxu0 0.0
    %614 = vmatpush.msra.mxu0 0.0
    %615 = vmatpush.msra.mxu0 0.0
    %616 = vmatpush.msra.mxu0 %v597
    %617 = vmatmul.f32.gmra.mxu0 %v599
    %v618 = vpop.f32.mrf.mxu0
    %v619 = vadd.f32 0.0, %v618
    %620 = vdwg.mxu0
    %v621 = vadd.f32 %v585, %v619
    %v622 = vld [vmem:[%s5] sm:$0xff]
    %624 = vset.pattern.permute.xlu0 0
    %625 = vperm.xlu0 %624, %v622
    %v626 = vpop.permute.xlu0 %625
    %v628 = vadd.f32 %v621, %v626
    %v629 = vadd.f32 %v628, %v102
    %v630 = vmax.f32 %v629, 0.0
    %631 = vst [vmem:[#allocation2 + $0x8] sm:$0xff] %v630
    %s632 = scalar_lea.vmem %s6, 32
    %v633 = vld [vmem:[%s632] sm:$0xff]
    %v634 = vld [vmem:[%s6] sm:$0xff]
    %v635 = vld [vmem:[#allocation2] sm:$0xff]
    %v636 = vld [vmem:[#allocation2 + $0x8] sm:$0xff]
    %639 = vrot.lane.b32.xlu0 %v635, 9
    %v640 = vpop.permute.xlu0 %639
    %641 = vrot.lane.b32.xlu0 %v636, 9
    %v642 = vpop.permute.xlu0 %641
    %v643 = vsel %vm263, %v640, %v642
    %v645 = vsel %vm258, %v643, 0.0
    %v647 = vsel %vm116, %v634, 0
    %649 = vmatpush.msra.mxu0 0.0
    %650 = vmatpush.msra.mxu0 0.0
    %651 = vmatpush.msra.mxu0 0.0
    %652 = vmatpush.msra.mxu0 0.0
    %653 = vmatpush.msra.mxu0 0.0
    %654 = vmatpush.msra.mxu0 0.0
    %655 = vmatpush.msra.mxu0 0.0
    %656 = vmatpush.msra.mxu0 0.0
    %657 = vmatpush.msra.mxu0 0.0
    %658 = vmatpush.msra.mxu0 0.0
    %659 = vmatpush.msra.mxu0 0.0
    %660 = vmatpush.msra.mxu0 0.0
    %661 = vmatpush.msra.mxu0 0.0
    %662 = vmatpush.msra.mxu0 0.0
    %663 = vmatpush.msra.mxu0 0.0
    %664 = vmatpush.msra.mxu0 %v645
    %665 = vmatmul.f32.gmra.mxu0 %v647
    %v666 = vpop.f32.mrf.mxu0
    %v667 = vadd.f32 0.0, %v666
    %668 = vdwg.mxu0
    %v670 = vsel %vm116, %v633, 0
    %672 = vmatpush.msra.mxu0 0.0
    %673 = vmatpush.msra.mxu0 0.0
    %674 = vmatpush.msra.mxu0 0.0
    %675 = vmatpush.msra.mxu0 0.0
    %676 = vmatpush.msra.mxu0 0.0
    %677 = vmatpush.msra.mxu0 0.0
    %678 = vmatpush.msra.mxu0 0.0
    %679 = vmatpush.msra.mxu0 0.0
    %680 = vmatpush.msra.mxu0 0.0
    %681 = vmatpush.msra.mxu0 0.0
    %682 = vmatpush.msra.mxu0 0.0
    %683 = vmatpush.msra.mxu0 0.0
    %684 = vmatpush.msra.mxu0 0.0
    %685 = vmatpush.msra.mxu0 0.0
    %686 = vmatpush.msra.mxu0 0.0
    %687 = vmatpush.msra.mxu0 %v630
    %688 = vmatmul.f32.gmra.mxu0 %v670
    %v689 = vpop.f32.mrf.mxu0
    %v690 = vadd.f32 %v667, %v689
    %691 = vdwg.mxu0
    %s692 = scalar_lea.vmem %s6, 8
    %v693 = vld [vmem:[%s692] sm:$0xff]
    %694 = vrot.lane.b32.xlu0 %v635, 8
    %v695 = vpop.permute.xlu0 %694
    %696 = vrot.lane.b32.xlu0 %v636, 8
    %v697 = vpop.permute.xlu0 %696
    %v698 = vsel %vm116, %v695, %v697
    %v700 = vsel %vm109, %v698, 0.0
    %v702 = vsel %vm116, %v693, 0
    %704 = vmatpush.msra.mxu0 0.0
    %705 = vmatpush.msra.mxu0 0.0
    %706 = vmatpush.msra.mxu0 0.0
    %707 = vmatpush.msra.mxu0 0.0
    %708 = vmatpush.msra.mxu0 0.0
    %709 = vmatpush.msra.mxu0 0.0
    %710 = vmatpush.msra.mxu0 0.0
    %711 = vmatpush.msra.mxu0 0.0
    %712 = vmatpush.msra.mxu0 0.0
    %713 = vmatpush.msra.mxu0 0.0
    %714 = vmatpush.msra.mxu0 0.0
    %715 = vmatpush.msra.mxu0 0.0
    %716 = vmatpush.msra.mxu0 0.0
    %717 = vmatpush.msra.mxu0 0.0
    %718 = vmatpush.msra.mxu0 0.0
    %719 = vmatpush.msra.mxu0 %v700
    %720 = vmatmul.f32.gmra.mxu0 %v702
    %v721 = vpop.f32.mrf.mxu0
    %v722 = vadd.f32 0.0, %v721
    %723 = vdwg.mxu0
    %v724 = vadd.f32 %v690, %v722
    %s725 = scalar_lea.vmem %s6, 16
    %v726 = vld [vmem:[%s725] sm:$0xff]
    %727 = vrot.lane.b32.xlu0 %v635, 7
    %v728 = vpop.permute.xlu0 %727
    %729 = vrot.lane.b32.xlu0 %v636, 7
    %v730 = vpop.permute.xlu0 %729
    %v731 = vsel %vm409, %v728, %v730
    %v733 = vsel %vm404, %v731, 0.0
    %v735 = vsel %vm116, %v726, 0
    %737 = vmatpush.msra.mxu0 0.0
    %738 = vmatpush.msra.mxu0 0.0
    %739 = vmatpush.msra.mxu0 0.0
    %740 = vmatpush.msra.mxu0 0.0
    %741 = vmatpush.msra.mxu0 0.0
    %742 = vmatpush.msra.mxu0 0.0
    %743 = vmatpush.msra.mxu0 0.0
    %744 = vmatpush.msra.mxu0 0.0
    %745 = vmatpush.msra.mxu0 0.0
    %746 = vmatpush.msra.mxu0 0.0
    %747 = vmatpush.msra.mxu0 0.0
    %748 = vmatpush.msra.mxu0 0.0
    %749 = vmatpush.msra.mxu0 0.0
    %750 = vmatpush.msra.mxu0 0.0
    %751 = vmatpush.msra.mxu0 0.0
    %752 = vmatpush.msra.mxu0 %v733
    %753 = vmatmul.f32.gmra.mxu0 %v735
    %v754 = vpop.f32.mrf.mxu0
    %v755 = vadd.f32 0.0, %v754
    %756 = vdwg.mxu0
    %v757 = vadd.f32 %v724, %v755
    %s758 = scalar_lea.vmem %s6, 24
    %v759 = vld [vmem:[%s758] sm:$0xff]
    %760 = vrot.lane.b32.xlu0 %v635, 1
    %v761 = vpop.permute.xlu0 %760
    %762 = vrot.lane.b32.xlu0 %v636, 1
    %v763 = vpop.permute.xlu0 %762
    %v764 = vsel %vm180, %v761, %v763
    %v766 = vsel %vm171, %v764, 0.0
    %v768 = vsel %vm116, %v759, 0
    %770 = vmatpush.msra.mxu0 0.0
    %771 = vmatpush.msra.mxu0 0.0
    %772 = vmatpush.msra.mxu0 0.0
    %773 = vmatpush.msra.mxu0 0.0
    %774 = vmatpush.msra.mxu0 0.0
    %775 = vmatpush.msra.mxu0 0.0
    %776 = vmatpush.msra.mxu0 0.0
    %777 = vmatpush.msra.mxu0 0.0
    %778 = vmatpush.msra.mxu0 0.0
    %779 = vmatpush.msra.mxu0 0.0
    %780 = vmatpush.msra.mxu0 0.0
    %781 = vmatpush.msra.mxu0 0.0
    %782 = vmatpush.msra.mxu0 0.0
    %783 = vmatpush.msra.mxu0 0.0
    %784 = vmatpush.msra.mxu0 0.0
    %785 = vmatpush.msra.mxu0 %v766
    %786 = vmatmul.f32.gmra.mxu0 %v768
    %v787 = vpop.f32.mrf.mxu0
    %v788 = vadd.f32 0.0, %v787
    %789 = vdwg.mxu0
    %v790 = vadd.f32 %v757, %v788
    %s791 = scalar_lea.vmem %s6, 40
    %v792 = vld [vmem:[%s791] sm:$0xff]
    %v793 = vld [vmem:[#allocation2 + $0x8] sm:$0xff]
    %v794 = vld [vmem:[#allocation2 + $0x10] sm:$0xff]
    %797 = vrot.lane.b32.xlu0 %v793, 127
    %v798 = vpop.permute.xlu0 %797
    %799 = vrot.lane.b32.xlu0 %v794, 127
    %v800 = vpop.permute.xlu0 %799
    %v801 = vsel %vm482, %v798, %v800
    %v803 = vsel %vm475, %v801, 0.0
    %v805 = vsel %vm116, %v792, 0
    %807 = vmatpush.msra.mxu0 0.0
    %808 = vmatpush.msra.mxu0 0.0
    %809 = vmatpush.msra.mxu0 0.0
    %810 = vmatpush.msra.mxu0 0.0
    %811 = vmatpush.msra.mxu0 0.0
    %812 = vmatpush.msra.mxu0 0.0
    %813 = vmatpush.msra.mxu0 0.0
    %814 = vmatpush.msra.mxu0 0.0
    %815 = vmatpush.msra.mxu0 0.0
    %816 = vmatpush.msra.mxu0 0.0
    %817 = vmatpush.msra.mxu0 0.0
    %818 = vmatpush.msra.mxu0 0.0
    %819 = vmatpush.msra.mxu0 0.0
    %820 = vmatpush.msra.mxu0 0.0
    %821 = vmatpush.msra.mxu0 0.0
    %822 = vmatpush.msra.mxu0 %v803
    %823 = vmatmul.f32.gmra.mxu0 %v805
    %v824 = vpop.f32.mrf.mxu0
    %v825 = vadd.f32 0.0, %v824
    %826 = vdwg.mxu0
    %v827 = vadd.f32 %v790, %v825
    %s828 = scalar_lea.vmem %s6, 48
    %v829 = vld [vmem:[%s828] sm:$0xff]
    %830 = vrot.lane.b32.xlu0 %v793, 121
    %v831 = vpop.permute.xlu0 %830
    %832 = vrot.lane.b32.xlu0 %v794, 121
    %v833 = vpop.permute.xlu0 %832
    %v834 = vsel %vm522, %v831, %v833
    %v836 = vsel %vm517, %v834, 0.0
    %v838 = vsel %vm116, %v829, 0
    %840 = vmatpush.msra.mxu0 0.0
    %841 = vmatpush.msra.mxu0 0.0
    %842 = vmatpush.msra.mxu0 0.0
    %843 = vmatpush.msra.mxu0 0.0
    %844 = vmatpush.msra.mxu0 0.0
    %845 = vmatpush.msra.mxu0 0.0
    %846 = vmatpush.msra.mxu0 0.0
    %847 = vmatpush.msra.mxu0 0.0
    %848 = vmatpush.msra.mxu0 0.0
    %849 = vmatpush.msra.mxu0 0.0
    %850 = vmatpush.msra.mxu0 0.0
    %851 = vmatpush.msra.mxu0 0.0
    %852 = vmatpush.msra.mxu0 0.0
    %853 = vmatpush.msra.mxu0 0.0
    %854 = vmatpush.msra.mxu0 0.0
    %855 = vmatpush.msra.mxu0 %v836
    %856 = vmatmul.f32.gmra.mxu0 %v838
    %v857 = vpop.f32.mrf.mxu0
    %v858 = vadd.f32 0.0, %v857
    %859 = vdwg.mxu0
    %v860 = vadd.f32 %v827, %v858
    %s861 = scalar_lea.vmem %s6, 56
    %v862 = vld [vmem:[%s861] sm:$0xff]
    %863 = vrot.lane.b32.xlu0 %v793, 120
    %v864 = vpop.permute.xlu0 %863
    %865 = vrot.lane.b32.xlu0 %v794, 120
    %v866 = vpop.permute.xlu0 %865
    %v867 = vsel %vm558, %v864, %v866
    %v869 = vsel %vm553, %v867, 0.0
    %v871 = vsel %vm116, %v862, 0
    %873 = vmatpush.msra.mxu0 0.0
    %874 = vmatpush.msra.mxu0 0.0
    %875 = vmatpush.msra.mxu0 0.0
    %876 = vmatpush.msra.mxu0 0.0
    %877 = vmatpush.msra.mxu0 0.0
    %878 = vmatpush.msra.mxu0 0.0
    %879 = vmatpush.msra.mxu0 0.0
    %880 = vmatpush.msra.mxu0 0.0
    %881 = vmatpush.msra.mxu0 0.0
    %882 = vmatpush.msra.mxu0 0.0
    %883 = vmatpush.msra.mxu0 0.0
    %884 = vmatpush.msra.mxu0 0.0
    %885 = vmatpush.msra.mxu0 0.0
    %886 = vmatpush.msra.mxu0 0.0
    %887 = vmatpush.msra.mxu0 0.0
    %888 = vmatpush.msra.mxu0 %v869
    %889 = vmatmul.f32.gmra.mxu0 %v871
    %v890 = vpop.f32.mrf.mxu0
    %v891 = vadd.f32 0.0, %v890
    %892 = vdwg.mxu0
    %v893 = vadd.f32 %v860, %v891
    %s894 = scalar_lea.vmem %s6, 64
    %v895 = vld [vmem:[%s894] sm:$0xff]
    %896 = vrot.lane.b32.xlu0 %v793, 119
    %v897 = vpop.permute.xlu0 %896
    %898 = vrot.lane.b32.xlu0 %v794, 119
    %v899 = vpop.permute.xlu0 %898
    %v900 = vsel %vm594, %v897, %v899
    %v902 = vsel %vm589, %v900, 0.0
    %v904 = vsel %vm116, %v895, 0
    %906 = vmatpush.msra.mxu0 0.0
    %907 = vmatpush.msra.mxu0 0.0
    %908 = vmatpush.msra.mxu0 0.0
    %909 = vmatpush.msra.mxu0 0.0
    %910 = vmatpush.msra.mxu0 0.0
    %911 = vmatpush.msra.mxu0 0.0
    %912 = vmatpush.msra.mxu0 0.0
    %913 = vmatpush.msra.mxu0 0.0
    %914 = vmatpush.msra.mxu0 0.0
    %915 = vmatpush.msra.mxu0 0.0
    %916 = vmatpush.msra.mxu0 0.0
    %917 = vmatpush.msra.mxu0 0.0
    %918 = vmatpush.msra.mxu0 0.0
    %919 = vmatpush.msra.mxu0 0.0
    %920 = vmatpush.msra.mxu0 0.0
    %921 = vmatpush.msra.mxu0 %v902
    %922 = vmatmul.f32.gmra.mxu0 %v904
    %v923 = vpop.f32.mrf.mxu0
    %v924 = vadd.f32 0.0, %v923
    %925 = vdwg.mxu0
    %v926 = vadd.f32 %v893, %v924
    %v927 = vld [vmem:[%s7] sm:$0xff]
    %929 = vset.pattern.permute.xlu0 0
    %930 = vperm.xlu0 %929, %v927
    %v931 = vpop.permute.xlu0 %930
    %v933 = vadd.f32 %v926, %v931
    %v934 = vmax.f32 %v933, 0.0
    %935 = vst [vmem:[#allocation2 + $0x8] sm:$0xff] %v934
    %s936 = scalar_lea.vmem %s8, 32
    %v937 = vld [vmem:[%s936] sm:$0xff]
    %v938 = vld [vmem:[%s8] sm:$0xff]
    %v939 = vld [vmem:[#allocation2] sm:$0xff]
    %v940 = vld [vmem:[#allocation2 + $0x8] sm:$0xff]
    %943 = vrot.lane.b32.xlu0 %v939, 9
    %v944 = vpop.permute.xlu0 %943
    %945 = vrot.lane.b32.xlu0 %v940, 9
    %v946 = vpop.permute.xlu0 %945
    %v947 = vsel %vm263, %v944, %v946
    %v949 = vsel %vm258, %v947, 0.0
    %v951 = vsel %vm116, %v938, 0
    %953 = vmatpush.msra.mxu0 0.0
    %954 = vmatpush.msra.mxu0 0.0
    %955 = vmatpush.msra.mxu0 0.0
    %956 = vmatpush.msra.mxu0 0.0
    %957 = vmatpush.msra.mxu0 0.0
    %958 = vmatpush.msra.mxu0 0.0
    %959 = vmatpush.msra.mxu0 0.0
    %960 = vmatpush.msra.mxu0 0.0
    %961 = vmatpush.msra.mxu0 0.0
    %962 = vmatpush.msra.mxu0 0.0
    %963 = vmatpush.msra.mxu0 0.0
    %964 = vmatpush.msra.mxu0 0.0
    %965 = vmatpush.msra.mxu0 0.0
    %966 = vmatpush.msra.mxu0 0.0
    %967 = vmatpush.msra.mxu0 0.0
    %968 = vmatpush.msra.mxu0 %v949
    %969 = vmatmul.f32.gmra.mxu0 %v951
    %v970 = vpop.f32.mrf.mxu0
    %v971 = vadd.f32 0.0, %v970
    %972 = vdwg.mxu0
    %v974 = vsel %vm116, %v937, 0
    %976 = vmatpush.msra.mxu0 0.0
    %977 = vmatpush.msra.mxu0 0.0
    %978 = vmatpush.msra.mxu0 0.0
    %979 = vmatpush.msra.mxu0 0.0
    %980 = vmatpush.msra.mxu0 0.0
    %981 = vmatpush.msra.mxu0 0.0
    %982 = vmatpush.msra.mxu0 0.0
    %983 = vmatpush.msra.mxu0 0.0
    %984 = vmatpush.msra.mxu0 0.0
    %985 = vmatpush.msra.mxu0 0.0
    %986 = vmatpush.msra.mxu0 0.0
    %987 = vmatpush.msra.mxu0 0.0
    %988 = vmatpush.msra.mxu0 0.0
    %989 = vmatpush.msra.mxu0 0.0
    %990 = vmatpush.msra.mxu0 0.0
    %991 = vmatpush.msra.mxu0 %v934
    %992 = vmatmul.f32.gmra.mxu0 %v974
    %v993 = vpop.f32.mrf.mxu0
    %v994 = vadd.f32 %v971, %v993
    %995 = vdwg.mxu0
    %s996 = scalar_lea.vmem %s8, 8
    %v997 = vld [vmem:[%s996] sm:$0xff]
    %998 = vrot.lane.b32.xlu0 %v939, 8
    %v999 = vpop.permute.xlu0 %998
    %1000 = vrot.lane.b32.xlu0 %v940, 8
    %v1001 = vpop.permute.xlu0 %1000
    %v1002 = vsel %vm116, %v999, %v1001
    %v1004 = vsel %vm109, %v1002, 0.0
    %v1006 = vsel %vm116, %v997, 0
    %1008 = vmatpush.msra.mxu0 0.0
    %1009 = vmatpush.msra.mxu0 0.0
    %1010 = vmatpush.msra.mxu0 0.0
    %1011 = vmatpush.msra.mxu0 0.0
    %1012 = vmatpush.msra.mxu0 0.0
    %1013 = vmatpush.msra.mxu0 0.0
    %1014 = vmatpush.msra.mxu0 0.0
    %1015 = vmatpush.msra.mxu0 0.0
    %1016 = vmatpush.msra.mxu0 0.0
    %1017 = vmatpush.msra.mxu0 0.0
    %1018 = vmatpush.msra.mxu0 0.0
    %1019 = vmatpush.msra.mxu0 0.0
    %1020 = vmatpush.msra.mxu0 0.0
    %1021 = vmatpush.msra.mxu0 0.0
    %1022 = vmatpush.msra.mxu0 0.0
    %1023 = vmatpush.msra.mxu0 %v1004
    %1024 = vmatmul.f32.gmra.mxu0 %v1006
    %v1025 = vpop.f32.mrf.mxu0
    %v1026 = vadd.f32 0.0, %v1025
    %1027 = vdwg.mxu0
    %v1028 = vadd.f32 %v994, %v1026
    %s1029 = scalar_lea.vmem %s8, 16
    %v1030 = vld [vmem:[%s1029] sm:$0xff]
    %1031 = vrot.lane.b32.xlu0 %v939, 7
    %v1032 = vpop.permute.xlu0 %1031
    %1033 = vrot.lane.b32.xlu0 %v940, 7
    %v1034 = vpop.permute.xlu0 %1033
    %v1035 = vsel %vm409, %v1032, %v1034
    %v1037 = vsel %vm404, %v1035, 0.0
    %v1039 = vsel %vm116, %v1030, 0
    %1041 = vmatpush.msra.mxu0 0.0
    %1042 = vmatpush.msra.mxu0 0.0
    %1043 = vmatpush.msra.mxu0 0.0
    %1044 = vmatpush.msra.mxu0 0.0
    %1045 = vmatpush.msra.mxu0 0.0
    %1046 = vmatpush.msra.mxu0 0.0
    %1047 = vmatpush.msra.mxu0 0.0
    %1048 = vmatpush.msra.mxu0 0.0
    %1049 = vmatpush.msra.mxu0 0.0
    %1050 = vmatpush.msra.mxu0 0.0
    %1051 = vmatpush.msra.mxu0 0.0
    %1052 = vmatpush.msra.mxu0 0.0
    %1053 = vmatpush.msra.mxu0 0.0
    %1054 = vmatpush.msra.mxu0 0.0
    %1055 = vmatpush.msra.mxu0 0.0
    %1056 = vmatpush.msra.mxu0 %v1037
    %1057 = vmatmul.f32.gmra.mxu0 %v1039
    %v1058 = vpop.f32.mrf.mxu0
    %v1059 = vadd.f32 0.0, %v1058
    %1060 = vdwg.mxu0
    %v1061 = vadd.f32 %v1028, %v1059
    %s1062 = scalar_lea.vmem %s8, 24
    %v1063 = vld [vmem:[%s1062] sm:$0xff]
    %1064 = vrot.lane.b32.xlu0 %v939, 1
    %v1065 = vpop.permute.xlu0 %1064
    %1066 = vrot.lane.b32.xlu0 %v940, 1
    %v1067 = vpop.permute.xlu0 %1066
    %v1068 = vsel %vm180, %v1065, %v1067
    %v1070 = vsel %vm171, %v1068, 0.0
    %v1072 = vsel %vm116, %v1063, 0
    %1074 = vmatpush.msra.mxu0 0.0
    %1075 = vmatpush.msra.mxu0 0.0
    %1076 = vmatpush.msra.mxu0 0.0
    %1077 = vmatpush.msra.mxu0 0.0
    %1078 = vmatpush.msra.mxu0 0.0
    %1079 = vmatpush.msra.mxu0 0.0
    %1080 = vmatpush.msra.mxu0 0.0
    %1081 = vmatpush.msra.mxu0 0.0
    %1082 = vmatpush.msra.mxu0 0.0
    %1083 = vmatpush.msra.mxu0 0.0
    %1084 = vmatpush.msra.mxu0 0.0
    %1085 = vmatpush.msra.mxu0 0.0
    %1086 = vmatpush.msra.mxu0 0.0
    %1087 = vmatpush.msra.mxu0 0.0
    %1088 = vmatpush.msra.mxu0 0.0
    %1089 = vmatpush.msra.mxu0 %v1070
    %1090 = vmatmul.f32.gmra.mxu0 %v1072
    %v1091 = vpop.f32.mrf.mxu0
    %v1092 = vadd.f32 0.0, %v1091
    %1093 = vdwg.mxu0
    %v1094 = vadd.f32 %v1061, %v1092
    %s1095 = scalar_lea.vmem %s8, 40
    %v1096 = vld [vmem:[%s1095] sm:$0xff]
    %v1097 = vld [vmem:[#allocation2 + $0x8] sm:$0xff]
    %v1098 = vld [vmem:[#allocation2 + $0x10] sm:$0xff]
    %1101 = vrot.lane.b32.xlu0 %v1097, 127
    %v1102 = vpop.permute.xlu0 %1101
    %1103 = vrot.lane.b32.xlu0 %v1098, 127
    %v1104 = vpop.permute.xlu0 %1103
    %v1105 = vsel %vm482, %v1102, %v1104
    %v1107 = vsel %vm475, %v1105, 0.0
    %v1109 = vsel %vm116, %v1096, 0
    %1111 = vmatpush.msra.mxu0 0.0
    %1112 = vmatpush.msra.mxu0 0.0
    %1113 = vmatpush.msra.mxu0 0.0
    %1114 = vmatpush.msra.mxu0 0.0
    %1115 = vmatpush.msra.mxu0 0.0
    %1116 = vmatpush.msra.mxu0 0.0
    %1117 = vmatpush.msra.mxu0 0.0
    %1118 = vmatpush.msra.mxu0 0.0
    %1119 = vmatpush.msra.mxu0 0.0
    %1120 = vmatpush.msra.mxu0 0.0
    %1121 = vmatpush.msra.mxu0 0.0
    %1122 = vmatpush.msra.mxu0 0.0
    %1123 = vmatpush.msra.mxu0 0.0
    %1124 = vmatpush.msra.mxu0 0.0
    %1125 = vmatpush.msra.mxu0 0.0
    %1126 = vmatpush.msra.mxu0 %v1107
    %1127 = vmatmul.f32.gmra.mxu0 %v1109
    %v1128 = vpop.f32.mrf.mxu0
    %v1129 = vadd.f32 0.0, %v1128
    %1130 = vdwg.mxu0
    %v1131 = vadd.f32 %v1094, %v1129
    %s1132 = scalar_lea.vmem %s8, 48
    %v1133 = vld [vmem:[%s1132] sm:$0xff]
    %1134 = vrot.lane.b32.xlu0 %v1097, 121
    %v1135 = vpop.permute.xlu0 %1134
    %1136 = vrot.lane.b32.xlu0 %v1098, 121
    %v1137 = vpop.permute.xlu0 %1136
    %v1138 = vsel %vm522, %v1135, %v1137
    %v1140 = vsel %vm517, %v1138, 0.0
    %v1142 = vsel %vm116, %v1133, 0
    %1144 = vmatpush.msra.mxu0 0.0
    %1145 = vmatpush.msra.mxu0 0.0
    %1146 = vmatpush.msra.mxu0 0.0
    %1147 = vmatpush.msra.mxu0 0.0
    %1148 = vmatpush.msra.mxu0 0.0
    %1149 = vmatpush.msra.mxu0 0.0
    %1150 = vmatpush.msra.mxu0 0.0
    %1151 = vmatpush.msra.mxu0 0.0
    %1152 = vmatpush.msra.mxu0 0.0
    %1153 = vmatpush.msra.mxu0 0.0
    %1154 = vmatpush.msra.mxu0 0.0
    %1155 = vmatpush.msra.mxu0 0.0
    %1156 = vmatpush.msra.mxu0 0.0
    %1157 = vmatpush.msra.mxu0 0.0
    %1158 = vmatpush.msra.mxu0 0.0
    %1159 = vmatpush.msra.mxu0 %v1140
    %1160 = vmatmul.f32.gmra.mxu0 %v1142
    %v1161 = vpop.f32.mrf.mxu0
    %v1162 = vadd.f32 0.0, %v1161
    %1163 = vdwg.mxu0
    %v1164 = vadd.f32 %v1131, %v1162
    %s1165 = scalar_lea.vmem %s8, 56
    %v1166 = vld [vmem:[%s1165] sm:$0xff]
    %1167 = vrot.lane.b32.xlu0 %v1097, 120
    %v1168 = vpop.permute.xlu0 %1167
    %1169 = vrot.lane.b32.xlu0 %v1098, 120
    %v1170 = vpop.permute.xlu0 %1169
    %v1171 = vsel %vm558, %v1168, %v1170
    %v1173 = vsel %vm553, %v1171, 0.0
    %v1175 = vsel %vm116, %v1166, 0
    %1177 = vmatpush.msra.mxu0 0.0
    %1178 = vmatpush.msra.mxu0 0.0
    %1179 = vmatpush.msra.mxu0 0.0
    %1180 = vmatpush.msra.mxu0 0.0
    %1181 = vmatpush.msra.mxu0 0.0
    %1182 = vmatpush.msra.mxu0 0.0
    %1183 = vmatpush.msra.mxu0 0.0
    %1184 = vmatpush.msra.mxu0 0.0
    %1185 = vmatpush.msra.mxu0 0.0
    %1186 = vmatpush.msra.mxu0 0.0
    %1187 = vmatpush.msra.mxu0 0.0
    %1188 = vmatpush.msra.mxu0 0.0
    %1189 = vmatpush.msra.mxu0 0.0
    %1190 = vmatpush.msra.mxu0 0.0
    %1191 = vmatpush.msra.mxu0 0.0
    %1192 = vmatpush.msra.mxu0 %v1173
    %1193 = vmatmul.f32.gmra.mxu0 %v1175
    %v1194 = vpop.f32.mrf.mxu0
    %v1195 = vadd.f32 0.0, %v1194
    %1196 = vdwg.mxu0
    %v1197 = vadd.f32 %v1164, %v1195
    %s1198 = scalar_lea.vmem %s8, 64
    %v1199 = vld [vmem:[%s1198] sm:$0xff]
    %1200 = vrot.lane.b32.xlu0 %v1097, 119
    %v1201 = vpop.permute.xlu0 %1200
    %1202 = vrot.lane.b32.xlu0 %v1098, 119
    %v1203 = vpop.permute.xlu0 %1202
    %v1204 = vsel %vm594, %v1201, %v1203
    %v1206 = vsel %vm589, %v1204, 0.0
    %v1208 = vsel %vm116, %v1199, 0
    %1210 = vmatpush.msra.mxu0 0.0
    %1211 = vmatpush.msra.mxu0 0.0
    %1212 = vmatpush.msra.mxu0 0.0
    %1213 = vmatpush.msra.mxu0 0.0
    %1214 = vmatpush.msra.mxu0 0.0
    %1215 = vmatpush.msra.mxu0 0.0
    %1216 = vmatpush.msra.mxu0 0.0
    %1217 = vmatpush.msra.mxu0 0.0
    %1218 = vmatpush.msra.mxu0 0.0
    %1219 = vmatpush.msra.mxu0 0.0
    %1220 = vmatpush.msra.mxu0 0.0
    %1221 = vmatpush.msra.mxu0 0.0
    %1222 = vmatpush.msra.mxu0 0.0
    %1223 = vmatpush.msra.mxu0 0.0
    %1224 = vmatpush.msra.mxu0 0.0
    %1225 = vmatpush.msra.mxu0 %v1206
    %1226 = vmatmul.f32.gmra.mxu0 %v1208
    %v1227 = vpop.f32.mrf.mxu0
    %v1228 = vadd.f32 0.0, %v1227
    %1229 = vdwg.mxu0
    %v1230 = vadd.f32 %v1197, %v1228
    %v1231 = vld [vmem:[%s9] sm:$0xff]
    %1233 = vset.pattern.permute.xlu0 0
    %1234 = vperm.xlu0 %1233, %v1231
    %v1235 = vpop.permute.xlu0 %1234
    %v1237 = vadd.f32 %v1230, %v1235
    %v1238 = vadd.f32 %v1237, %v630
    %v1239 = vmax.f32 %v1238, 0.0
    %v1240 = vld [vmem:[%s12] sm:$0xff]
    %v1241 = vld [vmem:[%s13] sm:$0xff]
    %v1243 = vsel %vm116, %v1241, 0
    %1245 = vmatpush.msra.mxu0 0.0
    %1246 = vmatpush.msra.mxu0 0.0
    %1247 = vmatpush.msra.mxu0 0.0
    %1248 = vmatpush.msra.mxu0 0.0
    %1249 = vmatpush.msra.mxu0 0.0
    %1250 = vmatpush.msra.mxu0 0.0
    %1251 = vmatpush.msra.mxu0 0.0
    %1252 = vmatpush.msra.mxu0 0.0
    %1253 = vmatpush.msra.mxu0 0.0
    %1254 = vmatpush.msra.mxu0 0.0
    %1255 = vmatpush.msra.mxu0 0.0
    %1256 = vmatpush.msra.mxu0 0.0
    %1257 = vmatpush.msra.mxu0 0.0
    %1258 = vmatpush.msra.mxu0 0.0
    %1259 = vmatpush.msra.mxu0 0.0
    %1260 = vmatpush.msra.mxu0 %v630
    %1261 = vmatmul.f32.gmra.mxu0 %v1243
    %v1262 = vpop.f32.mrf.mxu0
    %v1263 = vadd.f32 0.0, %v1262
    %1264 = vdwg.mxu0
    %v1266 = vsel %vm116, %v1240, 0
    %1268 = vmatpush.msra.mxu0 0.0
    %1269 = vmatpush.msra.mxu0 0.0
    %1270 = vmatpush.msra.mxu0 0.0
    %1271 = vmatpush.msra.mxu0 0.0
    %1272 = vmatpush.msra.mxu0 0.0
    %1273 = vmatpush.msra.mxu0 0.0
    %1274 = vmatpush.msra.mxu0 0.0
    %1275 = vmatpush.msra.mxu0 0.0
    %1276 = vmatpush.msra.mxu0 0.0
    %1277 = vmatpush.msra.mxu0 0.0
    %1278 = vmatpush.msra.mxu0 0.0
    %1279 = vmatpush.msra.mxu0 0.0
    %1280 = vmatpush.msra.mxu0 0.0
    %1281 = vmatpush.msra.mxu0 0.0
    %1282 = vmatpush.msra.mxu0 0.0
    %1283 = vmatpush.msra.mxu0 %v1239
    %1284 = vmatmul.f32.gmra.mxu0 %v1266
    %v1285 = vpop.f32.mrf.mxu0
    %v1286 = vadd.f32 %v1263, %v1285
    %1287 = vdwg.mxu0
    %v1288 = vld [vmem:[%s14] sm:$0xff]
    %v1290 = vsel %vm76, %v1288, 0
    %1292 = vmatpush.msra.mxu0 0.0
    %1293 = vmatpush.msra.mxu0 0.0
    %1294 = vmatpush.msra.mxu0 0.0
    %1295 = vmatpush.msra.mxu0 0.0
    %1296 = vmatpush.msra.mxu0 0.0
    %1297 = vmatpush.msra.mxu0 0.0
    %1298 = vmatpush.msra.mxu0 0.0
    %1299 = vmatpush.msra.mxu0 0.0
    %1300 = vmatpush.msra.mxu0 0.0
    %1301 = vmatpush.msra.mxu0 0.0
    %1302 = vmatpush.msra.mxu0 0.0
    %1303 = vmatpush.msra.mxu0 0.0
    %1304 = vmatpush.msra.mxu0 0.0
    %1305 = vmatpush.msra.mxu0 0.0
    %1306 = vmatpush.msra.mxu0 0.0
    %1307 = vmatpush.msra.mxu0 %v82
    %1308 = vmatmul.f32.gmra.mxu0 %v1290
    %v1309 = vpop.f32.mrf.mxu0
    %v1310 = vadd.f32 0.0, %v1309
    %1311 = vdwg.mxu0
    %v1312 = vadd.f32 %v1286, %v1310
    %v1313 = vld [vmem:[%s15] sm:$0xff]
    %1315 = vset.pattern.permute.xlu0 0
    %1316 = vperm.xlu0 %1315, %v1313
    %v1317 = vpop.permute.xlu0 %1316
    %v1319 = vadd.f32 %v1312, %v1317
    %v1320 = vmax.f32 %v1319, 0.0
    %1321 = vst [vmem:[#allocation3] sm:$0xff] %v1320
    // Predicated region
    $region66: #{tpu_custom_call.1} parent=1 // pred_check
      _
    $region67: #{tpu_custom_call.1} parent=1 // pred_check_branch
      %1323 = sbr.rel (0) target = $region69
    $region68: #{tpu_custom_call.1} parent=1 // pred_region
      %1325 = vsyncadd [#allocation4], 0
      %s1327 = sshll.u32 [#allocation3], 4
      %s1328 = int_to_ptr.vmem [resolvable:$true] %s1327
      %s1329 = sshll.u32 %s16, 4
      %s1330 = int_to_ptr.hbm [resolvable:$true] %s1329
      %1332 = dma.vmem_to_hbm [thread:$0]  %s1328, 128, %s1330, [#allocation4]
    $region69: #{tpu_custom_call.1} parent=1 // pred_fallthru
      _
    // Predicated region
    $region70: #{tpu_custom_call.1} parent=1 // pred_check
      _
    $region71: #{tpu_custom_call.1} parent=1 // pred_check_branch
      %1334 = sbr.rel (0) target = $region73
    $region72: #{tpu_custom_call.1} parent=1 // pred_region
      %1336 = dma.done [#allocation4], 128
    $region73: #{tpu_custom_call.1} parent=1 // pred_fallthru
      _
    %1337 = vsyncpa [#allocation4], 1

</llo_original>
